<compile_context>
chip_gen: v6e
topology: v6e:2x2x1
jax: 0.10.0
libtpu: 0.0.40
codegen_flags: <defaults>
</compile_context>

<pallas_src>
import functools

import jax
import jax.numpy as jnp
from jax import lax
from jax.experimental import pallas as pl
from jax.experimental.pallas import tpu as pltpu


def _round_up128(c):
    return ((c + 127) // 128) * 128


# ------------------------------ Pallas kernel -------------------------------

def _bottleneck_kernel(scal_ref, x_ref, sel_ref, w1_ref, w2_ref, w3_ref,
                       b1_ref, b2_ref, b3_ref, *rest, has_proj, use_softplus):
    if has_proj:
        ws_ref, bs_ref, o_ref = rest
    else:
        (o_ref,) = rest

    decay = scal_ref[0]          # runtime scalar (SMEM) -> no recompile on change
    beta = scal_ref[1]

    def act(y):
        # epilogue kept in f32 (v5e has no bf16 VPU/EUP)
        if use_softplus:
            z = beta * y
            inv_beta = 1.0 / beta
            # numerically-stable softplus, PyTorch threshold=20 linearization
            sp = (jnp.maximum(z, 0.0) + jnp.log1p(jnp.exp(-jnp.abs(z)))) * inv_beta
            return jnp.where(z > 20.0, y, sp)
        return jnp.maximum(y, 0.0)

    x_f32 = x_ref[0]                              # (H*W, Cin_p) f32
    x_bf = x_f32.astype(jnp.bfloat16)             # bf16 MXU operand

    # ---- conv1 (1x1) + bn1 (scale folded into w1) + nonlin ----
    out1 = jnp.dot(x_bf, w1_ref[...], preferred_element_type=jnp.float32)
    out1 = act(out1 + b1_ref[...])
    out1_bf = out1.astype(jnp.bfloat16)           # (H*W, Cm_p)

    # ---- conv2 (3x3, pad=1, stride) + bn2 + nonlin ----
    # 9 accumulating per-tap dots; spatial shift / zero-pad / stride handled by
    # a static 0/1 selector matmul (stays on the MXU, no HBM im2col).
    howo = sel_ref.shape[1]
    cm_p = w2_ref.shape[2]
    acc2 = jnp.zeros((howo, cm_p), jnp.float32)
    for t in range(9):
        shifted = jnp.dot(sel_ref[t], out1_bf,
                          preferred_element_type=jnp.float32)        # (HoWo, Cm_p)
        acc2 = acc2 + jnp.dot(shifted.astype(jnp.bfloat16), w2_ref[t],
                              preferred_element_type=jnp.float32)
    out2 = act(acc2 + b2_ref[...])
    out2_bf = out2.astype(jnp.bfloat16)

    # ---- conv3 (1x1) + bn3 ----
    out3 = jnp.dot(out2_bf, w3_ref[...], preferred_element_type=jnp.float32)
    out3 = out3 + b3_ref[...]

    # ---- shortcut ----
    if has_proj:
        # 1x1 stride-s conv: the centre-tap selector picks exactly (ho*s, wo*s)
        xs = jnp.dot(sel_ref[4], x_bf, preferred_element_type=jnp.float32)
        res = jnp.dot(xs.astype(jnp.bfloat16), ws_ref[...],
                      preferred_element_type=jnp.float32) + bs_ref[...]
    else:
        res = x_f32                                # identity (stride=1, Cin==Cout)

    # ---- out*decay + shortcut, nonlin, lane-dense store ----
    o_ref[0] = act(out3 * decay + res)


# ------------------------------ host packing --------------------------------

def _build_tap_selectors(H, W, stride):
    """(9, Ho*Wo, H*W) bf16 0/1 matrices: tap t picks input row for each output
    position (handles padding=1 zeros and the conv stride)."""
    Ho = (H + 2 - 3) // stride + 1
    Wo = (W + 2 - 3) // stride + 1
    ho = jnp.arange(Ho)
    wo = jnp.arange(Wo)
    sels = []
    for kh in range(3):
        for kw in range(3):
            ih = ho * stride + kh - 1
            iw = wo * stride + kw - 1
            valid = (((ih >= 0) & (ih < H))[:, None]
                     & ((iw >= 0) & (iw < W))[None, :])              # (Ho, Wo)
            src = (jnp.clip(ih, 0, H - 1)[:, None] * W
                   + jnp.clip(iw, 0, W - 1)[None, :])                # (Ho, Wo)
            onehot = jax.nn.one_hot(src.reshape(-1), H * W, dtype=jnp.float32)
            sels.append(onehot * valid.reshape(-1, 1).astype(jnp.float32))
    return jnp.stack(sels, 0).astype(jnp.bfloat16), Ho, Wo


def _pack_1x1(w, scale, cin_p, cout_p):
    # (Cout, Cin, 1, 1) -> (Cin_p, Cout_p) bf16, BN scale folded into columns
    w2d = jnp.transpose(w[:, :, 0, 0], (1, 0)) * scale[None, :]
    w2d = jnp.pad(w2d, ((0, cin_p - w2d.shape[0]), (0, cout_p - w2d.shape[1])))
    return w2d.astype(jnp.bfloat16)


def _pack_3x3(w, scale, cin_p, cout_p):
    # (Cout, Cin, 3, 3) -> (9, Cin_p, Cout_p) bf16, tap index t = kh*3 + kw
    cout, cin = w.shape[0], w.shape[1]
    w_t = jnp.transpose(w, (2, 3, 1, 0)).reshape(9, cin, cout) * scale[None, None, :]
    w_t = jnp.pad(w_t, ((0, 0), (0, cin_p - cin), (0, cout_p - cout)))
    return w_t.astype(jnp.bfloat16)


def _pack_bias(bias, c_p):
    return jnp.pad(bias, (0, c_p - bias.shape[0])).reshape(1, c_p).astype(jnp.float32)


def _fold_bn(num_features, eps=1e-5):
    # gamma=1, beta=0, running_mean=0, running_var=1 (deterministic init)
    gamma = jnp.ones((num_features,), jnp.float32)
    beta_p = jnp.zeros((num_features,), jnp.float32)
    mean = jnp.zeros((num_features,), jnp.float32)
    var = jnp.ones((num_features,), jnp.float32)
    scale = gamma / jnp.sqrt(var + eps)
    bias = beta_p - mean * scale
    return scale, bias


def init_bottleneck_params(key, in_planes, planes, stride):
    expansion = 4
    k1, k2, k3, k4 = jax.random.split(key, 4)
    p = {
        "w1": 0.1 * jax.random.normal(k1, (planes, in_planes, 1, 1), jnp.float32),
        "w2": 0.1 * jax.random.normal(k2, (planes, planes, 3, 3), jnp.float32),
        "w3": 0.1 * jax.random.normal(k3, (expansion * planes, planes, 1, 1),
                                      jnp.float32),
    }
    p["s1"], p["b1"] = _fold_bn(planes)
    p["s2"], p["b2"] = _fold_bn(planes)
    p["s3"], p["b3"] = _fold_bn(expansion * planes)
    if stride != 1 or in_planes != expansion * planes:
        p["ws"] = 0.1 * jax.random.normal(k4, (expansion * planes, in_planes, 1, 1),
                                          jnp.float32)
        p["ss"], p["bs"] = _fold_bn(expansion * planes)
    return p


# ------------------------------ forward wrapper ------------------------------

def bottleneck_forward(x_nchw, params, *, stride=1, decay=1.0, beta_value=0.0):
    """Pallas-accelerated Bottleneck.forward (NCHW in / NCHW out)."""
    x = jnp.transpose(x_nchw, (0, 2, 3, 1)).astype(jnp.float32)     # NHWC
    N, H, W, Cin = x.shape
    planes = params["w1"].shape[0]
    Cout = params["w3"].shape[0]
    cin_p, cm_p, co_p = _round_up128(Cin), _round_up128(planes), _round_up128(Cout)

    sel, Ho, Wo = _build_tap_selectors(H, W, stride)
    HW, HoWo = H * W, Ho * Wo

    # zero-pad channels to 128 lanes (padded weight rows are zero -> no leakage)
    x3d = jnp.pad(x, ((0, 0), (0, 0), (0, 0), (0, cin_p - Cin))).reshape(N, HW, cin_p)

    w1 = _pack_1x1(params["w1"], params["s1"], cin_p, cm_p)
    w2 = _pack_3x3(params["w2"], params["s2"], cm_p, cm_p)
    w3 = _pack_1x1(params["w3"], params["s3"], cm_p, co_p)
    b1 = _pack_bias(params["b1"], cm_p)
    b2 = _pack_bias(params["b2"], cm_p)
    b3 = _pack_bias(params["b3"], co_p)
    scal = jnp.array([decay, beta_value], jnp.float32)

    has_proj = "ws" in params
    use_softplus = beta_value > 0.0     # structural choice, same as nn module ctor

    args = [scal, x3d, sel, w1, w2, w3, b1, b2, b3]
    in_specs = [
        pl.BlockSpec(memory_space=pltpu.MemorySpace.SMEM),           # [decay, beta]
        pl.BlockSpec((1, HW, cin_p), lambda n: (n, 0, 0)),           # x (per image)
        pl.BlockSpec((9, HoWo, HW), lambda n: (0, 0, 0)),            # tap selectors
        pl.BlockSpec((cin_p, cm_p), lambda n: (0, 0)),               # w1 (bn folded)
        pl.BlockSpec((9, cm_p, cm_p), lambda n: (0, 0, 0)),          # w2 taps
        pl.BlockSpec((cm_p, co_p), lambda n: (0, 0)),                # w3
        pl.BlockSpec((1, cm_p), lambda n: (0, 0)),                   # b1
        pl.BlockSpec((1, cm_p), lambda n: (0, 0)),                   # b2
        pl.BlockSpec((1, co_p), lambda n: (0, 0)),                   # b3
    ]
    if has_proj:
        args += [_pack_1x1(params["ws"], params["ss"], cin_p, co_p),
                 _pack_bias(params["bs"], co_p)]
        in_specs += [pl.BlockSpec((cin_p, co_p), lambda n: (0, 0)),
                     pl.BlockSpec((1, co_p), lambda n: (0, 0))]
    else:
        assert Cin == Cout and stride == 1, "identity shortcut shape mismatch"

    kernel = functools.partial(_bottleneck_kernel, has_proj=has_proj,
                               use_softplus=use_softplus)

    out = pl.pallas_call(
        kernel,
        out_shape=jax.ShapeDtypeStruct((N, HoWo, co_p), jnp.float32),
        grid=(N,),                                   # >=2 blocks -> both v7x TCs busy
        in_specs=in_specs,
        out_specs=pl.BlockSpec((1, HoWo, co_p), lambda n: (n, 0, 0)),
        compiler_params=pltpu.CompilerParams(
            dimension_semantics=("parallel",),
            # fused working set is ~1-2 MiB; explicit limit safe on v5e/v6e/v7x
            vmem_limit_bytes=32 * 1024 * 1024),
    )(*args)

    out = out[:, :, :Cout].reshape(N, Ho, Wo, Cout)
    return jnp.transpose(out, (0, 3, 1, 2))          # -> NCHW


# ---------------------------- pure-JAX reference -----------------------------

def _ref_forward(x_nchw, params, *, stride, decay, beta_value):
    x = jnp.transpose(x_nchw, (0, 2, 3, 1)).astype(jnp.float32)
    dn = ("NHWC", "HWIO", "NHWC")
    hwio = lambda w: jnp.transpose(w, (2, 3, 1, 0))

    def act(y):
        if beta_value > 0:
            z = beta_value * y
            sp = (jnp.maximum(z, 0.0) + jnp.log1p(jnp.exp(-jnp.abs(z)))) / beta_value
            return jnp.where(z > 20.0, y, sp)
        return jnp.maximum(y, 0.0)

    o = lax.conv_general_dilated(x, hwio(params["w1"]), (1, 1), "VALID",
                                 dimension_numbers=dn)
    o = act(o * params["s1"] + params["b1"])
    o = lax.conv_general_dilated(o, hwio(params["w2"]), (stride, stride),
                                 ((1, 1), (1, 1)), dimension_numbers=dn)
    o = act(o * params["s2"] + params["b2"])
    o = lax.conv_general_dilated(o, hwio(params["w3"]), (1, 1), "VALID",
                                 dimension_numbers=dn)
    o = o * params["s3"] + params["b3"]
    if "ws" in params:
        sc = lax.conv_general_dilated(x, hwio(params["ws"]), (stride, stride),
                                      "VALID", dimension_numbers=dn)
        sc = sc * params["ss"] + params["bs"]
    else:
        sc = x
    o = act(o * decay + sc)
    return jnp.transpose(o, (0, 3, 1, 2))


# ----------------------------------- main ------------------------------------

if __name__ == "__main__":
    key = jax.random.PRNGKey(0)
    kx1, kp1, kx2, kp2 = jax.random.split(key, 4)

    # config 1: projection shortcut (stride 2), ReLU nonlin
    batch, in_planes, planes, spatial = 2, 16, 8, 8
    stride, decay, beta_value = 2, 0.9, 0.0
    x = jax.random.normal(kx1, (batch, in_planes, spatial, spatial), jnp.float32)
    params = init_bottleneck_params(kp1, in_planes, planes, stride)

    out = bottleneck_forward(x, params, stride=stride, decay=decay,
                             beta_value=beta_value)
    out = jax.block_until_ready(out)
    ref = _ref_forward(x, params, stride=stride, decay=decay,
                       beta_value=beta_value)
    assert out.shape == ref.shape == (batch, 4 * planes,
                                      spatial // stride, spatial // stride)
    # bf16 MXU operands (per perf guidance) vs f32 reference -> relaxed tolerance
    assert jnp.allclose(out, ref, atol=5e-2, rtol=5e-2), \
        float(jnp.max(jnp.abs(out - ref)))

    # config 2: identity shortcut (stride 1, in_planes == 4*planes), Softplus
    batch2, planes2, spatial2 = 2, 8, 8
    in_planes2 = 4 * planes2
    x2 = jax.random.normal(kx2, (batch2, in_planes2, spatial2, spatial2),
                           jnp.float32)
    params2 = init_bottleneck_params(kp2, in_planes2, planes2, 1)

    out2 = bottleneck_forward(x2, params2, stride=1, decay=1.0, beta_value=1.5)
    out2 = jax.block_until_ready(out2)
    ref2 = _ref_forward(x2, params2, stride=1, decay=1.0, beta_value=1.5)
    assert out2.shape == ref2.shape == (batch2, 4 * planes2, spatial2, spatial2)
    assert jnp.allclose(out2, ref2, atol=5e-2, rtol=5e-2), \
        float(jnp.max(jnp.abs(out2 - ref2)))

    print("KERNEL_OK")
</pallas_src>

<mosaic_0001>
module attributes {stable_mosaic.version = 11 : i64} {
  func.func @_bottleneck_kernel(%arg0: i32, %arg1: memref<2xf32, #tpu.memory_space<smem>>, %arg2: memref<1x64x128xf32, #tpu.memory_space<vmem>>, %arg3: memref<9x16x64xbf16, #tpu.memory_space<vmem>>, %arg4: memref<128x128xbf16, #tpu.memory_space<vmem>>, %arg5: memref<9x128x128xbf16, #tpu.memory_space<vmem>>, %arg6: memref<128x128xbf16, #tpu.memory_space<vmem>>, %arg7: memref<1x128xf32, #tpu.memory_space<vmem>>, %arg8: memref<1x128xf32, #tpu.memory_space<vmem>>, %arg9: memref<1x128xf32, #tpu.memory_space<vmem>>, %arg10: memref<128x128xbf16, #tpu.memory_space<vmem>>, %arg11: memref<1x128xf32, #tpu.memory_space<vmem>>, %arg12: memref<1x16x128xf32, #tpu.memory_space<vmem>>) attributes {dimension_semantics = [#tpu.dimension_semantics<parallel>], iteration_bounds = array<i64: 2>, scalar_prefetch = 0 : i64, scratch_operands = 0 : i64, tpu.core_type = #tpu.core_type<tc>, window_params = [{transform_indices = @transform_0, window_bounds = array<i64: 2>}, {transform_indices = @transform_1, window_bounds = array<i64: 1, 64, 128>}, {pipeline_mode = #tpu.pipeline_mode<synchronous>, transform_indices = @transform_2, window_bounds = array<i64: 9, 16, 64>}, {pipeline_mode = #tpu.pipeline_mode<synchronous>, transform_indices = @transform_3, window_bounds = array<i64: 128, 128>}, {pipeline_mode = #tpu.pipeline_mode<synchronous>, transform_indices = @transform_4, window_bounds = array<i64: 9, 128, 128>}, {pipeline_mode = #tpu.pipeline_mode<synchronous>, transform_indices = @transform_5, window_bounds = array<i64: 128, 128>}, {pipeline_mode = #tpu.pipeline_mode<synchronous>, transform_indices = @transform_6, window_bounds = array<i64: 1, 128>}, {pipeline_mode = #tpu.pipeline_mode<synchronous>, transform_indices = @transform_7, window_bounds = array<i64: 1, 128>}, {pipeline_mode = #tpu.pipeline_mode<synchronous>, transform_indices = @transform_8, window_bounds = array<i64: 1, 128>}, {pipeline_mode = #tpu.pipeline_mode<synchronous>, transform_indices = @transform_9, window_bounds = array<i64: 128, 128>}, {pipeline_mode = #tpu.pipeline_mode<synchronous>, transform_indices = @transform_10, window_bounds = array<i64: 1, 128>}, {transform_indices = @transform_11, window_bounds = array<i64: 1, 16, 128>}]} {
    %c0 = arith.constant 0 : index
    %0 = memref.load %arg1[%c0] : memref<2xf32, #tpu.memory_space<smem>>
    %c0_0 = arith.constant 0 : index
    %c0_1 = arith.constant 0 : index
    %c0_2 = arith.constant 0 : index
    %1 = vector.load %arg2[%c0_0, %c0_1, %c0_2] : memref<1x64x128xf32, #tpu.memory_space<vmem>>, vector<1x64x128xf32>
    %2 = vector.shape_cast %1 : vector<1x64x128xf32> to vector<64x128xf32>
    %3 = arith.truncf %2 : vector<64x128xf32> to vector<64x128xbf16>
    %c0_3 = arith.constant 0 : index
    %c0_4 = arith.constant 0 : index
    %4 = vector.load %arg4[%c0_3, %c0_4] : memref<128x128xbf16, #tpu.memory_space<vmem>>, vector<128x128xbf16>
    %cst = arith.constant dense<0.000000e+00> : vector<64x128xf32>
    %5 = tpu.matmul %3, %4, %cst {dimension_numbers = #tpu.dot_dimension_numbers<[1], [0], [0], [1], [0, 0, 1, 1], [], []>} : vector<64x128xbf16>, vector<128x128xbf16>, vector<64x128xf32> -> vector<64x128xf32>
    %c0_5 = arith.constant 0 : index
    %c0_6 = arith.constant 0 : index
    %6 = vector.load %arg7[%c0_5, %c0_6] : memref<1x128xf32, #tpu.memory_space<vmem>>, vector<1x128xf32>
    %7 = vector.broadcast %6 : vector<1x128xf32> to vector<64x128xf32>
    %8 = arith.addf %5, %7 : vector<64x128xf32>
    %cst_7 = arith.constant 0.000000e+00 : f32
    %9 = vector.broadcast %cst_7 : f32 to vector<64x128xf32>
    %10 = arith.maximumf %8, %9 : vector<64x128xf32>
    %11 = arith.truncf %10 : vector<64x128xf32> to vector<64x128xbf16>
    %cst_8 = arith.constant 0.000000e+00 : f32
    %12 = vector.broadcast %cst_8 : f32 to vector<16x128xf32>
    %c0_9 = arith.constant 0 : index
    %c0_10 = arith.constant 0 : index
    %c0_11 = arith.constant 0 : index
    %13 = vector.load %arg3[%c0_9, %c0_10, %c0_11] : memref<9x16x64xbf16, #tpu.memory_space<vmem>>, vector<1x16x64xbf16>
    %14 = vector.shape_cast %13 : vector<1x16x64xbf16> to vector<16x64xbf16>
    %cst_12 = arith.constant dense<0.000000e+00> : vector<16x128xf32>
    %15 = tpu.matmul %14, %11, %cst_12 {dimension_numbers = #tpu.dot_dimension_numbers<[1], [0], [0], [1], [0, 0, 1, 1], [], []>} : vector<16x64xbf16>, vector<64x128xbf16>, vector<16x128xf32> -> vector<16x128xf32>
    %16 = arith.truncf %15 : vector<16x128xf32> to vector<16x128xbf16>
    %c0_13 = arith.constant 0 : index
    %c0_14 = arith.constant 0 : index
    %c0_15 = arith.constant 0 : index
    %17 = vector.load %arg5[%c0_13, %c0_14, %c0_15] : memref<9x128x128xbf16, #tpu.memory_space<vmem>>, vector<1x128x128xbf16>
    %18 = vector.shape_cast %17 : vector<1x128x128xbf16> to vector<128x128xbf16>
    %cst_16 = arith.constant dense<0.000000e+00> : vector<16x128xf32>
    %19 = tpu.matmul %16, %18, %cst_16 {dimension_numbers = #tpu.dot_dimension_numbers<[1], [0], [0], [1], [0, 0, 1, 1], [], []>} : vector<16x128xbf16>, vector<128x128xbf16>, vector<16x128xf32> -> vector<16x128xf32>
    %20 = arith.addf %12, %19 : vector<16x128xf32>
    %c1 = arith.constant 1 : index
    %c0_17 = arith.constant 0 : index
    %c0_18 = arith.constant 0 : index
    %21 = vector.load %arg3[%c1, %c0_17, %c0_18] : memref<9x16x64xbf16, #tpu.memory_space<vmem>>, vector<1x16x64xbf16>
    %22 = vector.shape_cast %21 : vector<1x16x64xbf16> to vector<16x64xbf16>
    %cst_19 = arith.constant dense<0.000000e+00> : vector<16x128xf32>
    %23 = tpu.matmul %22, %11, %cst_19 {dimension_numbers = #tpu.dot_dimension_numbers<[1], [0], [0], [1], [0, 0, 1, 1], [], []>} : vector<16x64xbf16>, vector<64x128xbf16>, vector<16x128xf32> -> vector<16x128xf32>
    %24 = arith.truncf %23 : vector<16x128xf32> to vector<16x128xbf16>
    %c1_20 = arith.constant 1 : index
    %c0_21 = arith.constant 0 : index
    %c0_22 = arith.constant 0 : index
    %25 = vector.load %arg5[%c1_20, %c0_21, %c0_22] : memref<9x128x128xbf16, #tpu.memory_space<vmem>>, vector<1x128x128xbf16>
    %26 = vector.shape_cast %25 : vector<1x128x128xbf16> to vector<128x128xbf16>
    %cst_23 = arith.constant dense<0.000000e+00> : vector<16x128xf32>
    %27 = tpu.matmul %24, %26, %cst_23 {dimension_numbers = #tpu.dot_dimension_numbers<[1], [0], [0], [1], [0, 0, 1, 1], [], []>} : vector<16x128xbf16>, vector<128x128xbf16>, vector<16x128xf32> -> vector<16x128xf32>
    %28 = arith.addf %20, %27 : vector<16x128xf32>
    %c2 = arith.constant 2 : index
    %c0_24 = arith.constant 0 : index
    %c0_25 = arith.constant 0 : index
    %29 = vector.load %arg3[%c2, %c0_24, %c0_25] : memref<9x16x64xbf16, #tpu.memory_space<vmem>>, vector<1x16x64xbf16>
    %30 = vector.shape_cast %29 : vector<1x16x64xbf16> to vector<16x64xbf16>
    %cst_26 = arith.constant dense<0.000000e+00> : vector<16x128xf32>
    %31 = tpu.matmul %30, %11, %cst_26 {dimension_numbers = #tpu.dot_dimension_numbers<[1], [0], [0], [1], [0, 0, 1, 1], [], []>} : vector<16x64xbf16>, vector<64x128xbf16>, vector<16x128xf32> -> vector<16x128xf32>
    %32 = arith.truncf %31 : vector<16x128xf32> to vector<16x128xbf16>
    %c2_27 = arith.constant 2 : index
    %c0_28 = arith.constant 0 : index
    %c0_29 = arith.constant 0 : index
    %33 = vector.load %arg5[%c2_27, %c0_28, %c0_29] : memref<9x128x128xbf16, #tpu.memory_space<vmem>>, vector<1x128x128xbf16>
    %34 = vector.shape_cast %33 : vector<1x128x128xbf16> to vector<128x128xbf16>
    %cst_30 = arith.constant dense<0.000000e+00> : vector<16x128xf32>
    %35 = tpu.matmul %32, %34, %cst_30 {dimension_numbers = #tpu.dot_dimension_numbers<[1], [0], [0], [1], [0, 0, 1, 1], [], []>} : vector<16x128xbf16>, vector<128x128xbf16>, vector<16x128xf32> -> vector<16x128xf32>
    %36 = arith.addf %28, %35 : vector<16x128xf32>
    %c3 = arith.constant 3 : index
    %c0_31 = arith.constant 0 : index
    %c0_32 = arith.constant 0 : index
    %37 = vector.load %arg3[%c3, %c0_31, %c0_32] : memref<9x16x64xbf16, #tpu.memory_space<vmem>>, vector<1x16x64xbf16>
    %38 = vector.shape_cast %37 : vector<1x16x64xbf16> to vector<16x64xbf16>
    %cst_33 = arith.constant dense<0.000000e+00> : vector<16x128xf32>
    %39 = tpu.matmul %38, %11, %cst_33 {dimension_numbers = #tpu.dot_dimension_numbers<[1], [0], [0], [1], [0, 0, 1, 1], [], []>} : vector<16x64xbf16>, vector<64x128xbf16>, vector<16x128xf32> -> vector<16x128xf32>
    %40 = arith.truncf %39 : vector<16x128xf32> to vector<16x128xbf16>
    %c3_34 = arith.constant 3 : index
    %c0_35 = arith.constant 0 : index
    %c0_36 = arith.constant 0 : index
    %41 = vector.load %arg5[%c3_34, %c0_35, %c0_36] : memref<9x128x128xbf16, #tpu.memory_space<vmem>>, vector<1x128x128xbf16>
    %42 = vector.shape_cast %41 : vector<1x128x128xbf16> to vector<128x128xbf16>
    %cst_37 = arith.constant dense<0.000000e+00> : vector<16x128xf32>
    %43 = tpu.matmul %40, %42, %cst_37 {dimension_numbers = #tpu.dot_dimension_numbers<[1], [0], [0], [1], [0, 0, 1, 1], [], []>} : vector<16x128xbf16>, vector<128x128xbf16>, vector<16x128xf32> -> vector<16x128xf32>
    %44 = arith.addf %36, %43 : vector<16x128xf32>
    %c4 = arith.constant 4 : index
    %c0_38 = arith.constant 0 : index
    %c0_39 = arith.constant 0 : index
    %45 = vector.load %arg3[%c4, %c0_38, %c0_39] : memref<9x16x64xbf16, #tpu.memory_space<vmem>>, vector<1x16x64xbf16>
    %46 = vector.shape_cast %45 : vector<1x16x64xbf16> to vector<16x64xbf16>
    %cst_40 = arith.constant dense<0.000000e+00> : vector<16x128xf32>
    %47 = tpu.matmul %46, %11, %cst_40 {dimension_numbers = #tpu.dot_dimension_numbers<[1], [0], [0], [1], [0, 0, 1, 1], [], []>} : vector<16x64xbf16>, vector<64x128xbf16>, vector<16x128xf32> -> vector<16x128xf32>
    %48 = arith.truncf %47 : vector<16x128xf32> to vector<16x128xbf16>
    %c4_41 = arith.constant 4 : index
    %c0_42 = arith.constant 0 : index
    %c0_43 = arith.constant 0 : index
    %49 = vector.load %arg5[%c4_41, %c0_42, %c0_43] : memref<9x128x128xbf16, #tpu.memory_space<vmem>>, vector<1x128x128xbf16>
    %50 = vector.shape_cast %49 : vector<1x128x128xbf16> to vector<128x128xbf16>
    %cst_44 = arith.constant dense<0.000000e+00> : vector<16x128xf32>
    %51 = tpu.matmul %48, %50, %cst_44 {dimension_numbers = #tpu.dot_dimension_numbers<[1], [0], [0], [1], [0, 0, 1, 1], [], []>} : vector<16x128xbf16>, vector<128x128xbf16>, vector<16x128xf32> -> vector<16x128xf32>
    %52 = arith.addf %44, %51 : vector<16x128xf32>
    %c5 = arith.constant 5 : index
    %c0_45 = arith.constant 0 : index
    %c0_46 = arith.constant 0 : index
    %53 = vector.load %arg3[%c5, %c0_45, %c0_46] : memref<9x16x64xbf16, #tpu.memory_space<vmem>>, vector<1x16x64xbf16>
    %54 = vector.shape_cast %53 : vector<1x16x64xbf16> to vector<16x64xbf16>
    %cst_47 = arith.constant dense<0.000000e+00> : vector<16x128xf32>
    %55 = tpu.matmul %54, %11, %cst_47 {dimension_numbers = #tpu.dot_dimension_numbers<[1], [0], [0], [1], [0, 0, 1, 1], [], []>} : vector<16x64xbf16>, vector<64x128xbf16>, vector<16x128xf32> -> vector<16x128xf32>
    %56 = arith.truncf %55 : vector<16x128xf32> to vector<16x128xbf16>
    %c5_48 = arith.constant 5 : index
    %c0_49 = arith.constant 0 : index
    %c0_50 = arith.constant 0 : index
    %57 = vector.load %arg5[%c5_48, %c0_49, %c0_50] : memref<9x128x128xbf16, #tpu.memory_space<vmem>>, vector<1x128x128xbf16>
    %58 = vector.shape_cast %57 : vector<1x128x128xbf16> to vector<128x128xbf16>
    %cst_51 = arith.constant dense<0.000000e+00> : vector<16x128xf32>
    %59 = tpu.matmul %56, %58, %cst_51 {dimension_numbers = #tpu.dot_dimension_numbers<[1], [0], [0], [1], [0, 0, 1, 1], [], []>} : vector<16x128xbf16>, vector<128x128xbf16>, vector<16x128xf32> -> vector<16x128xf32>
    %60 = arith.addf %52, %59 : vector<16x128xf32>
    %c6 = arith.constant 6 : index
    %c0_52 = arith.constant 0 : index
    %c0_53 = arith.constant 0 : index
    %61 = vector.load %arg3[%c6, %c0_52, %c0_53] : memref<9x16x64xbf16, #tpu.memory_space<vmem>>, vector<1x16x64xbf16>
    %62 = vector.shape_cast %61 : vector<1x16x64xbf16> to vector<16x64xbf16>
    %cst_54 = arith.constant dense<0.000000e+00> : vector<16x128xf32>
    %63 = tpu.matmul %62, %11, %cst_54 {dimension_numbers = #tpu.dot_dimension_numbers<[1], [0], [0], [1], [0, 0, 1, 1], [], []>} : vector<16x64xbf16>, vector<64x128xbf16>, vector<16x128xf32> -> vector<16x128xf32>
    %64 = arith.truncf %63 : vector<16x128xf32> to vector<16x128xbf16>
    %c6_55 = arith.constant 6 : index
    %c0_56 = arith.constant 0 : index
    %c0_57 = arith.constant 0 : index
    %65 = vector.load %arg5[%c6_55, %c0_56, %c0_57] : memref<9x128x128xbf16, #tpu.memory_space<vmem>>, vector<1x128x128xbf16>
    %66 = vector.shape_cast %65 : vector<1x128x128xbf16> to vector<128x128xbf16>
    %cst_58 = arith.constant dense<0.000000e+00> : vector<16x128xf32>
    %67 = tpu.matmul %64, %66, %cst_58 {dimension_numbers = #tpu.dot_dimension_numbers<[1], [0], [0], [1], [0, 0, 1, 1], [], []>} : vector<16x128xbf16>, vector<128x128xbf16>, vector<16x128xf32> -> vector<16x128xf32>
    %68 = arith.addf %60, %67 : vector<16x128xf32>
    %c7 = arith.constant 7 : index
    %c0_59 = arith.constant 0 : index
    %c0_60 = arith.constant 0 : index
    %69 = vector.load %arg3[%c7, %c0_59, %c0_60] : memref<9x16x64xbf16, #tpu.memory_space<vmem>>, vector<1x16x64xbf16>
    %70 = vector.shape_cast %69 : vector<1x16x64xbf16> to vector<16x64xbf16>
    %cst_61 = arith.constant dense<0.000000e+00> : vector<16x128xf32>
    %71 = tpu.matmul %70, %11, %cst_61 {dimension_numbers = #tpu.dot_dimension_numbers<[1], [0], [0], [1], [0, 0, 1, 1], [], []>} : vector<16x64xbf16>, vector<64x128xbf16>, vector<16x128xf32> -> vector<16x128xf32>
    %72 = arith.truncf %71 : vector<16x128xf32> to vector<16x128xbf16>
    %c7_62 = arith.constant 7 : index
    %c0_63 = arith.constant 0 : index
    %c0_64 = arith.constant 0 : index
    %73 = vector.load %arg5[%c7_62, %c0_63, %c0_64] : memref<9x128x128xbf16, #tpu.memory_space<vmem>>, vector<1x128x128xbf16>
    %74 = vector.shape_cast %73 : vector<1x128x128xbf16> to vector<128x128xbf16>
    %cst_65 = arith.constant dense<0.000000e+00> : vector<16x128xf32>
    %75 = tpu.matmul %72, %74, %cst_65 {dimension_numbers = #tpu.dot_dimension_numbers<[1], [0], [0], [1], [0, 0, 1, 1], [], []>} : vector<16x128xbf16>, vector<128x128xbf16>, vector<16x128xf32> -> vector<16x128xf32>
    %76 = arith.addf %68, %75 : vector<16x128xf32>
    %c8 = arith.constant 8 : index
    %c0_66 = arith.constant 0 : index
    %c0_67 = arith.constant 0 : index
    %77 = vector.load %arg3[%c8, %c0_66, %c0_67] : memref<9x16x64xbf16, #tpu.memory_space<vmem>>, vector<1x16x64xbf16>
    %78 = vector.shape_cast %77 : vector<1x16x64xbf16> to vector<16x64xbf16>
    %cst_68 = arith.constant dense<0.000000e+00> : vector<16x128xf32>
    %79 = tpu.matmul %78, %11, %cst_68 {dimension_numbers = #tpu.dot_dimension_numbers<[1], [0], [0], [1], [0, 0, 1, 1], [], []>} : vector<16x64xbf16>, vector<64x128xbf16>, vector<16x128xf32> -> vector<16x128xf32>
    %80 = arith.truncf %79 : vector<16x128xf32> to vector<16x128xbf16>
    %c8_69 = arith.constant 8 : index
    %c0_70 = arith.constant 0 : index
    %c0_71 = arith.constant 0 : index
    %81 = vector.load %arg5[%c8_69, %c0_70, %c0_71] : memref<9x128x128xbf16, #tpu.memory_space<vmem>>, vector<1x128x128xbf16>
    %82 = vector.shape_cast %81 : vector<1x128x128xbf16> to vector<128x128xbf16>
    %cst_72 = arith.constant dense<0.000000e+00> : vector<16x128xf32>
    %83 = tpu.matmul %80, %82, %cst_72 {dimension_numbers = #tpu.dot_dimension_numbers<[1], [0], [0], [1], [0, 0, 1, 1], [], []>} : vector<16x128xbf16>, vector<128x128xbf16>, vector<16x128xf32> -> vector<16x128xf32>
    %84 = arith.addf %76, %83 : vector<16x128xf32>
    %c0_73 = arith.constant 0 : index
    %c0_74 = arith.constant 0 : index
    %85 = vector.load %arg8[%c0_73, %c0_74] : memref<1x128xf32, #tpu.memory_space<vmem>>, vector<1x128xf32>
    %86 = vector.broadcast %85 : vector<1x128xf32> to vector<16x128xf32>
    %87 = arith.addf %84, %86 : vector<16x128xf32>
    %cst_75 = arith.constant 0.000000e+00 : f32
    %88 = vector.broadcast %cst_75 : f32 to vector<16x128xf32>
    %89 = arith.maximumf %87, %88 : vector<16x128xf32>
    %90 = arith.truncf %89 : vector<16x128xf32> to vector<16x128xbf16>
    %c0_76 = arith.constant 0 : index
    %c0_77 = arith.constant 0 : index
    %91 = vector.load %arg6[%c0_76, %c0_77] : memref<128x128xbf16, #tpu.memory_space<vmem>>, vector<128x128xbf16>
    %cst_78 = arith.constant dense<0.000000e+00> : vector<16x128xf32>
    %92 = tpu.matmul %90, %91, %cst_78 {dimension_numbers = #tpu.dot_dimension_numbers<[1], [0], [0], [1], [0, 0, 1, 1], [], []>} : vector<16x128xbf16>, vector<128x128xbf16>, vector<16x128xf32> -> vector<16x128xf32>
    %c0_79 = arith.constant 0 : index
    %c0_80 = arith.constant 0 : index
    %93 = vector.load %arg9[%c0_79, %c0_80] : memref<1x128xf32, #tpu.memory_space<vmem>>, vector<1x128xf32>
    %94 = vector.broadcast %93 : vector<1x128xf32> to vector<16x128xf32>
    %95 = arith.addf %92, %94 : vector<16x128xf32>
    %c4_81 = arith.constant 4 : index
    %c0_82 = arith.constant 0 : index
    %c0_83 = arith.constant 0 : index
    %96 = vector.load %arg3[%c4_81, %c0_82, %c0_83] : memref<9x16x64xbf16, #tpu.memory_space<vmem>>, vector<1x16x64xbf16>
    %97 = vector.shape_cast %96 : vector<1x16x64xbf16> to vector<16x64xbf16>
    %cst_84 = arith.constant dense<0.000000e+00> : vector<16x128xf32>
    %98 = tpu.matmul %97, %3, %cst_84 {dimension_numbers = #tpu.dot_dimension_numbers<[1], [0], [0], [1], [0, 0, 1, 1], [], []>} : vector<16x64xbf16>, vector<64x128xbf16>, vector<16x128xf32> -> vector<16x128xf32>
    %99 = arith.truncf %98 : vector<16x128xf32> to vector<16x128xbf16>
    %c0_85 = arith.constant 0 : index
    %c0_86 = arith.constant 0 : index
    %100 = vector.load %arg10[%c0_85, %c0_86] : memref<128x128xbf16, #tpu.memory_space<vmem>>, vector<128x128xbf16>
    %cst_87 = arith.constant dense<0.000000e+00> : vector<16x128xf32>
    %101 = tpu.matmul %99, %100, %cst_87 {dimension_numbers = #tpu.dot_dimension_numbers<[1], [0], [0], [1], [0, 0, 1, 1], [], []>} : vector<16x128xbf16>, vector<128x128xbf16>, vector<16x128xf32> -> vector<16x128xf32>
    %c0_88 = arith.constant 0 : index
    %c0_89 = arith.constant 0 : index
    %102 = vector.load %arg11[%c0_88, %c0_89] : memref<1x128xf32, #tpu.memory_space<vmem>>, vector<1x128xf32>
    %103 = vector.broadcast %102 : vector<1x128xf32> to vector<16x128xf32>
    %104 = arith.addf %101, %103 : vector<16x128xf32>
    %105 = vector.broadcast %0 : f32 to vector<16x128xf32>
    %106 = arith.mulf %95, %105 : vector<16x128xf32>
    %107 = arith.addf %106, %104 : vector<16x128xf32>
    %cst_90 = arith.constant 0.000000e+00 : f32
    %108 = vector.broadcast %cst_90 : f32 to vector<16x128xf32>
    %109 = arith.maximumf %107, %108 : vector<16x128xf32>
    %c0_91 = arith.constant 0 : index
    %c0_92 = arith.constant 0 : index
    %c0_93 = arith.constant 0 : index
    %110 = vector.load %arg12[%c0_91, %c0_92, %c0_93] : memref<1x16x128xf32, #tpu.memory_space<vmem>>, vector<1x16x128xf32>
    %111 = vector.shape_cast %110 : vector<1x16x128xf32> to vector<16x128xf32>
    %112 = vector.shape_cast %109 : vector<16x128xf32> to vector<1x16x128xf32>
    tpu.vector_store %arg12[%c0_91, %c0_92, %c0_93], %112 {strides = array<i32>} : memref<1x16x128xf32, #tpu.memory_space<vmem>>, vector<1x16x128xf32>,
    return
  }
  func.func @transform_0(%arg0: i32) -> i32 {
    %c0_i32 = arith.constant 0 : i32
    %c0_i32_0 = arith.constant 0 : i32
    return %c0_i32 : i32
  }
  func.func @transform_1(%arg0: i32) -> (i32, i32, i32) {
    %c0_i32 = arith.constant 0 : i32
    %c0_i32_0 = arith.constant 0 : i32
    %c0_i32_1 = arith.constant 0 : i32
    return %arg0, %c0_i32, %c0_i32_0 : i32, i32, i32
  }
  func.func @transform_2(%arg0: i32) -> (i32, i32, i32) {
    %c0_i32 = arith.constant 0 : i32
    %c0_i32_0 = arith.constant 0 : i32
    %c0_i32_1 = arith.constant 0 : i32
    %c0_i32_2 = arith.constant 0 : i32
    return %c0_i32, %c0_i32_0, %c0_i32_1 : i32, i32, i32
  }
  func.func @transform_3(%arg0: i32) -> (i32, i32) {
    %c0_i32 = arith.constant 0 : i32
    %c0_i32_0 = arith.constant 0 : i32
    %c0_i32_1 = arith.constant 0 : i32
    return %c0_i32, %c0_i32_0 : i32, i32
  }
  func.func @transform_4(%arg0: i32) -> (i32, i32, i32) {
    %c0_i32 = arith.constant 0 : i32
    %c0_i32_0 = arith.constant 0 : i32
    %c0_i32_1 = arith.constant 0 : i32
    %c0_i32_2 = arith.constant 0 : i32
    return %c0_i32, %c0_i32_0, %c0_i32_1 : i32, i32, i32
  }
  func.func @transform_5(%arg0: i32) -> (i32, i32) {
    %c0_i32 = arith.constant 0 : i32
    %c0_i32_0 = arith.constant 0 : i32
    %c0_i32_1 = arith.constant 0 : i32
    return %c0_i32, %c0_i32_0 : i32, i32
  }
  func.func @transform_6(%arg0: i32) -> (i32, i32) {
    %c0_i32 = arith.constant 0 : i32
    %c0_i32_0 = arith.constant 0 : i32
    %c0_i32_1 = arith.constant 0 : i32
    return %c0_i32, %c0_i32_0 : i32, i32
  }
  func.func @transform_7(%arg0: i32) -> (i32, i32) {
    %c0_i32 = arith.constant 0 : i32
    %c0_i32_0 = arith.constant 0 : i32
    %c0_i32_1 = arith.constant 0 : i32
    return %c0_i32, %c0_i32_0 : i32, i32
  }
  func.func @transform_8(%arg0: i32) -> (i32, i32) {
    %c0_i32 = arith.constant 0 : i32
    %c0_i32_0 = arith.constant 0 : i32
    %c0_i32_1 = arith.constant 0 : i32
    return %c0_i32, %c0_i32_0 : i32, i32
  }
  func.func @transform_9(%arg0: i32) -> (i32, i32) {
    %c0_i32 = arith.constant 0 : i32
    %c0_i32_0 = arith.constant 0 : i32
    %c0_i32_1 = arith.constant 0 : i32
    return %c0_i32, %c0_i32_0 : i32, i32
  }
  func.func @transform_10(%arg0: i32) -> (i32, i32) {
    %c0_i32 = arith.constant 0 : i32
    %c0_i32_0 = arith.constant 0 : i32
    %c0_i32_1 = arith.constant 0 : i32
    return %c0_i32, %c0_i32_0 : i32, i32
  }
  func.func @transform_11(%arg0: i32) -> (i32, i32, i32) {
    %c0_i32 = arith.constant 0 : i32
    %c0_i32_0 = arith.constant 0 : i32
    %c0_i32_1 = arith.constant 0 : i32
    return %arg0, %c0_i32, %c0_i32_0 : i32, i32, i32
  }
}

</mosaic_0001>

<llo_original>
// kernel: tpu_custom_call.1
$region0: #{tpu_custom_call.1}
  #allocation0 [shape = 'u32[]', space=smem, size = 0x4, offset = 0x4, fixed_abs, tag = 'smem constant byte address 0x4 - core index']
  #allocation1 [shape = 'u32[144,128]{1,0:T(1,128)}', space=vmem, size = 0x12000, scoped, tag = 'internal scratch']
  %s0 = inlined_call_operand.hbm [shape: f32[2], index: 0, kind: input, shape index: {}]
  %s1 = inlined_call_operand.hbm [shape: f32[2,64,128], index: 1, kind: input, shape index: {}]
  %s2 = inlined_call_operand.hbm [shape: bf16[9,16,64], index: 2, kind: input, shape index: {}]
  %s3 = inlined_call_operand.hbm [shape: bf16[128,128], index: 3, kind: input, shape index: {}]
  %s4 = inlined_call_operand.hbm [shape: bf16[9,128,128], index: 4, kind: input, shape index: {}]
  %s5 = inlined_call_operand.hbm [shape: bf16[128,128], index: 5, kind: input, shape index: {}]
  %s6 = inlined_call_operand.vmem [shape: f32[1,128], index: 6, kind: input, shape index: {}]
  %s7 = inlined_call_operand.vmem [shape: f32[1,128], index: 7, kind: input, shape index: {}]
  %s8 = inlined_call_operand.vmem [shape: f32[1,128], index: 8, kind: input, shape index: {}]
  %s9 = inlined_call_operand.hbm [shape: bf16[128,128], index: 9, kind: input, shape index: {}]
  %s10 = inlined_call_operand.vmem [shape: f32[1,128], index: 10, kind: input, shape index: {}]
  %s11 = inlined_call_operand.hbm [shape: f32[2,16,128], index: 11, kind: output, shape index: {}]
  %s12 = sld [smem:[#allocation0]]
  $region105: #{tpu_custom_call.1} parent=0
    _
  %s14 = ssub.s32 1, %s12
  %s15 = scalar_select 0, %s14, %s12
  $region1: #{tpu_custom_call.1} parent=0
    #allocation2 [shape = 'u8[512]{0}', space=smem, size = 0x200, scoped, tag = 'input window, operand 0, single buffered']
    #allocation3 [shape = 's32[2]{0}', space=sflag, size = 0x8, scoped, tag = 'scoped memory for tpu_custom_call.1']
    #allocation4 [shape = 's32[2]{0}', space=sflag, size = 0x8, scoped, tag = 'scoped memory for tpu_custom_call.1']
    #allocation5 [shape = 's32[2]{0}', space=sflag, size = 0x8, scoped, tag = 'scoped memory for tpu_custom_call.1']
    #allocation6 [shape = 'u8[65536]{0}', space=vmem, size = 0x10000, scoped, tag = 'input window, operand 1']
    #allocation7 [shape = 'u8[36864]{0}', space=vmem, size = 0x9000, scoped, tag = 'input window, operand 2, single buffered']
    #allocation8 [shape = 's32[1]{0}', space=sflag, size = 0x4, scoped, tag = 'scoped memory for tpu_custom_call.1']
    #allocation9 [shape = 'u8[32768]{0}', space=vmem, size = 0x8000, scoped, tag = 'input window, operand 3, single buffered']
    #allocation10 [shape = 'u8[294912]{0}', space=vmem, size = 0x48000, scoped, tag = 'input window, operand 4, single buffered']
    #allocation11 [shape = 's32[1]{0}', space=sflag, size = 0x4, scoped, tag = 'scoped memory for tpu_custom_call.1']
    #allocation12 [shape = 'u8[32768]{0}', space=vmem, size = 0x8000, scoped, tag = 'input window, operand 5, single buffered']
    #allocation13 [shape = 'u8[32768]{0}', space=vmem, size = 0x8000, scoped, tag = 'input window, operand 9, single buffered']
    #allocation14 [shape = 's32[1]{0}', space=sflag, size = 0x4, scoped, tag = 'scoped memory for tpu_custom_call.1']
    #allocation15 [shape = 'u8[16384]{0}', space=vmem, size = 0x4000, scoped, tag = 'output window, operand 0']
    %16 = vsyncpa [#allocation5], 0
    %17 = vsyncpa [#allocation3], 0
    %s18 = scalar_lea.sflag [#allocation3], 1
    %19 = vsyncpa %s18, 0
    %20 = vsyncpa [#allocation8], 0
    %21 = vsyncpa [#allocation11], 0
    %22 = vsyncpa [#allocation14], 0
    %23 = vsyncpa [#allocation4], 0
    %s24 = scalar_lea.sflag [#allocation4], 1
    %25 = vsyncpa %s24, 0
    loop: start=0, step=1, limit=4
    $region2: #{tpu_custom_call.1} parent=1 // loop_pre_header
      _
    $region3: #{tpu_custom_call.1} parent=1 // loop_header
      %s27 = sphi 0, %s31
      %p28 = scmp.ge.s32.totalorder %s27, 4
      %s35 = sphi 0, %s35
      %s37 = sphi 0, %s35
      %s38 = sphi 0, %s37
      %s52 = sphi 0, %s38
      %s58 = sphi 0, %s60
      %s61 = sphi 0, %s58
      %s62 = sphi 0, %s61
      %s78 = sphi 0, %s62
      %s82 = sphi 0, %s82
      %s84 = sphi 0, %s82
      %s85 = sphi 0, %s84
      %s99 = sphi 0, %s85
      %s103 = sphi 0, %s103
      %s105 = sphi 0, %s103
      %s106 = sphi 0, %s105
      %s120 = sphi 0, %s106
      %s124 = sphi 0, %s124
      %s126 = sphi 0, %s124
      %s127 = sphi 0, %s126
      %s141 = sphi 0, %s127
      %s145 = sphi 0, %s145
      %s147 = sphi 0, %s145
      %s148 = sphi 0, %s147
      %s162 = sphi 0, %s148
      %s166 = sphi 0, %s166
      %s168 = sphi 0, %s166
      %s169 = sphi 0, %s168
      %s183 = sphi 0, %s169
      %s187 = sphi 0, %s187
      %s189 = sphi 0, %s187
      %s190 = sphi 0, %s189
      %s204 = sphi 0, %s190
      %s208 = sphi 0, %s208
      %s210 = sphi 0, %s208
      %s211 = sphi 0, %s210
      %s225 = sphi 0, %s211
      %s229 = sphi 0, %s229
      %s231 = sphi 0, %s229
      %s232 = sphi 0, %s231
      %s246 = sphi 0, %s232
      %s250 = sphi 0, %s250
      %s252 = sphi 0, %s250
      %s253 = sphi 0, %s252
      %s267 = sphi 0, %s253
      %s273 = sphi 0, %s275
      %s276 = sphi 0, %s273
      %s277 = sphi 0, %s276
      %s293 = sphi 0, %s277
    $region4: #{tpu_custom_call.1} parent=1 // loop_header_branch
      %30 = sbr.rel (%p28) target = $region8
    $region5: #{tpu_custom_call.1} parent=1 // loop_body
      %s32 = ssub.s32 %s27, 1
      %s33 = ssub.s32 %s27, 2
      %s34 = sadd.s32 %s27, 1
      %s36 = sadd.s32 %s35, 1
      %p39 = scmp.eq.s32.totalorder %s27, 1
      %p40 = scmp.ne.s32.totalorder %s35, %s37
      %p41 = scmp.eq.s32.totalorder %s27, 0
      %p42 = por %p40, %p41
      %p43 = scmp.ne.s32.totalorder %s35, %s37
      %p44 = scmp.eq.s32.totalorder %s32, 1
      %p45 = por %p43, %p44
      %p46 = scmp.ne.s32.totalorder %s37, %s38
      %p47 = scmp.eq.s32.totalorder %s32, 0
      %p48 = por %p46, %p47
      %p49 = scmp.ne.s32.totalorder %s37, %s38
      %p50 = scmp.eq.s32.totalorder %s33, 1
      %p51 = por %p49, %p50
      %p53 = scmp.ne.s32.totalorder %s38, %s52
      %p54 = scmp.eq.s32.totalorder %s33, 0
      %p55 = por %p53, %p54
      %s56 = ssub.s32 %s27, %s34
      %p57 = scmp.eq.s32.totalorder %s56, 0
      %s59 = sadd.s32 %s58, 1
      %s60 = scalar_select %p57, %s58, %s59
      %p63 = pneg %p57
      %p64 = scmp.eq.s32.totalorder %s27, 1
      %p65 = por %p63, %p64
      %p66 = scmp.ne.s32.totalorder %s58, %s61
      %p67 = scmp.eq.s32.totalorder %s27, 0
      %p68 = por %p66, %p67
      %p69 = scmp.ne.s32.totalorder %s58, %s61
      %p70 = scmp.eq.s32.totalorder %s32, 1
      %p71 = por %p69, %p70
      %p72 = scmp.ne.s32.totalorder %s61, %s62
      %p73 = scmp.eq.s32.totalorder %s32, 0
      %p74 = por %p72, %p73
      %p75 = scmp.ne.s32.totalorder %s61, %s62
      %p76 = scmp.eq.s32.totalorder %s33, 1
      %p77 = por %p75, %p76
      %p79 = scmp.ne.s32.totalorder %s62, %s78
      %p80 = scmp.eq.s32.totalorder %s33, 0
      %p81 = por %p79, %p80
      %s83 = sadd.s32 %s82, 1
      %p86 = scmp.eq.s32.totalorder %s27, 1
      %p87 = scmp.ne.s32.totalorder %s82, %s84
      %p88 = scmp.eq.s32.totalorder %s27, 0
      %p89 = por %p87, %p88
      %p90 = scmp.ne.s32.totalorder %s82, %s84
      %p91 = scmp.eq.s32.totalorder %s32, 1
      %p92 = por %p90, %p91
      %p93 = scmp.ne.s32.totalorder %s84, %s85
      %p94 = scmp.eq.s32.totalorder %s32, 0
      %p95 = por %p93, %p94
      %p96 = scmp.ne.s32.totalorder %s84, %s85
      %p97 = scmp.eq.s32.totalorder %s33, 1
      %p98 = por %p96, %p97
      %p100 = scmp.ne.s32.totalorder %s85, %s99
      %p101 = scmp.eq.s32.totalorder %s33, 0
      %p102 = por %p100, %p101
      %s104 = sadd.s32 %s103, 1
      %p107 = scmp.eq.s32.totalorder %s27, 1
      %p108 = scmp.ne.s32.totalorder %s103, %s105
      %p109 = scmp.eq.s32.totalorder %s27, 0
      %p110 = por %p108, %p109
      %p111 = scmp.ne.s32.totalorder %s103, %s105
      %p112 = scmp.eq.s32.totalorder %s32, 1
      %p113 = por %p111, %p112
      %p114 = scmp.ne.s32.totalorder %s105, %s106
      %p115 = scmp.eq.s32.totalorder %s32, 0
      %p116 = por %p114, %p115
      %p117 = scmp.ne.s32.totalorder %s105, %s106
      %p118 = scmp.eq.s32.totalorder %s33, 1
      %p119 = por %p117, %p118
      %p121 = scmp.ne.s32.totalorder %s106, %s120
      %p122 = scmp.eq.s32.totalorder %s33, 0
      %p123 = por %p121, %p122
      %s125 = sadd.s32 %s124, 1
      %p128 = scmp.eq.s32.totalorder %s27, 1
      %p129 = scmp.ne.s32.totalorder %s124, %s126
      %p130 = scmp.eq.s32.totalorder %s27, 0
      %p131 = por %p129, %p130
      %p132 = scmp.ne.s32.totalorder %s124, %s126
      %p133 = scmp.eq.s32.totalorder %s32, 1
      %p134 = por %p132, %p133
      %p135 = scmp.ne.s32.totalorder %s126, %s127
      %p136 = scmp.eq.s32.totalorder %s32, 0
      %p137 = por %p135, %p136
      %p138 = scmp.ne.s32.totalorder %s126, %s127
      %p139 = scmp.eq.s32.totalorder %s33, 1
      %p140 = por %p138, %p139
      %p142 = scmp.ne.s32.totalorder %s127, %s141
      %p143 = scmp.eq.s32.totalorder %s33, 0
      %p144 = por %p142, %p143
      %s146 = sadd.s32 %s145, 1
      %p149 = scmp.eq.s32.totalorder %s27, 1
      %p150 = scmp.ne.s32.totalorder %s145, %s147
      %p151 = scmp.eq.s32.totalorder %s27, 0
      %p152 = por %p150, %p151
      %p153 = scmp.ne.s32.totalorder %s145, %s147
      %p154 = scmp.eq.s32.totalorder %s32, 1
      %p155 = por %p153, %p154
      %p156 = scmp.ne.s32.totalorder %s147, %s148
      %p157 = scmp.eq.s32.totalorder %s32, 0
      %p158 = por %p156, %p157
      %p159 = scmp.ne.s32.totalorder %s147, %s148
      %p160 = scmp.eq.s32.totalorder %s33, 1
      %p161 = por %p159, %p160
      %p163 = scmp.ne.s32.totalorder %s148, %s162
      %p164 = scmp.eq.s32.totalorder %s33, 0
      %p165 = por %p163, %p164
      %s167 = sadd.s32 %s166, 1
      %p170 = scmp.eq.s32.totalorder %s27, 1
      %p171 = scmp.ne.s32.totalorder %s166, %s168
      %p172 = scmp.eq.s32.totalorder %s27, 0
      %p173 = por %p171, %p172
      %p174 = scmp.ne.s32.totalorder %s166, %s168
      %p175 = scmp.eq.s32.totalorder %s32, 1
      %p176 = por %p174, %p175
      %p177 = scmp.ne.s32.totalorder %s168, %s169
      %p178 = scmp.eq.s32.totalorder %s32, 0
      %p179 = por %p177, %p178
      %p180 = scmp.ne.s32.totalorder %s168, %s169
      %p181 = scmp.eq.s32.totalorder %s33, 1
      %p182 = por %p180, %p181
      %p184 = scmp.ne.s32.totalorder %s169, %s183
      %p185 = scmp.eq.s32.totalorder %s33, 0
      %p186 = por %p184, %p185
      %s188 = sadd.s32 %s187, 1
      %p191 = scmp.eq.s32.totalorder %s27, 1
      %p192 = scmp.ne.s32.totalorder %s187, %s189
      %p193 = scmp.eq.s32.totalorder %s27, 0
      %p194 = por %p192, %p193
      %p195 = scmp.ne.s32.totalorder %s187, %s189
      %p196 = scmp.eq.s32.totalorder %s32, 1
      %p197 = por %p195, %p196
      %p198 = scmp.ne.s32.totalorder %s189, %s190
      %p199 = scmp.eq.s32.totalorder %s32, 0
      %p200 = por %p198, %p199
      %p201 = scmp.ne.s32.totalorder %s189, %s190
      %p202 = scmp.eq.s32.totalorder %s33, 1
      %p203 = por %p201, %p202
      %p205 = scmp.ne.s32.totalorder %s190, %s204
      %p206 = scmp.eq.s32.totalorder %s33, 0
      %p207 = por %p205, %p206
      %s209 = sadd.s32 %s208, 1
      %p212 = scmp.eq.s32.totalorder %s27, 1
      %p213 = scmp.ne.s32.totalorder %s208, %s210
      %p214 = scmp.eq.s32.totalorder %s27, 0
      %p215 = por %p213, %p214
      %p216 = scmp.ne.s32.totalorder %s208, %s210
      %p217 = scmp.eq.s32.totalorder %s32, 1
      %p218 = por %p216, %p217
      %p219 = scmp.ne.s32.totalorder %s210, %s211
      %p220 = scmp.eq.s32.totalorder %s32, 0
      %p221 = por %p219, %p220
      %p222 = scmp.ne.s32.totalorder %s210, %s211
      %p223 = scmp.eq.s32.totalorder %s33, 1
      %p224 = por %p222, %p223
      %p226 = scmp.ne.s32.totalorder %s211, %s225
      %p227 = scmp.eq.s32.totalorder %s33, 0
      %p228 = por %p226, %p227
      %s230 = sadd.s32 %s229, 1
      %p233 = scmp.eq.s32.totalorder %s27, 1
      %p234 = scmp.ne.s32.totalorder %s229, %s231
      %p235 = scmp.eq.s32.totalorder %s27, 0
      %p236 = por %p234, %p235
      %p237 = scmp.ne.s32.totalorder %s229, %s231
      %p238 = scmp.eq.s32.totalorder %s32, 1
      %p239 = por %p237, %p238
      %p240 = scmp.ne.s32.totalorder %s231, %s232
      %p241 = scmp.eq.s32.totalorder %s32, 0
      %p242 = por %p240, %p241
      %p243 = scmp.ne.s32.totalorder %s231, %s232
      %p244 = scmp.eq.s32.totalorder %s33, 1
      %p245 = por %p243, %p244
      %p247 = scmp.ne.s32.totalorder %s232, %s246
      %p248 = scmp.eq.s32.totalorder %s33, 0
      %p249 = por %p247, %p248
      %s251 = sadd.s32 %s250, 1
      %p254 = scmp.eq.s32.totalorder %s27, 1
      %p255 = scmp.ne.s32.totalorder %s250, %s252
      %p256 = scmp.eq.s32.totalorder %s27, 0
      %p257 = por %p255, %p256
      %p258 = scmp.ne.s32.totalorder %s250, %s252
      %p259 = scmp.eq.s32.totalorder %s32, 1
      %p260 = por %p258, %p259
      %p261 = scmp.ne.s32.totalorder %s252, %s253
      %p262 = scmp.eq.s32.totalorder %s32, 0
      %p263 = por %p261, %p262
      %p264 = scmp.ne.s32.totalorder %s252, %s253
      %p265 = scmp.eq.s32.totalorder %s33, 1
      %p266 = por %p264, %p265
      %p268 = scmp.ne.s32.totalorder %s253, %s267
      %p269 = scmp.eq.s32.totalorder %s33, 0
      %p270 = por %p268, %p269
      %s271 = ssub.s32 %s27, %s34
      %p272 = scmp.eq.s32.totalorder %s271, 0
      %s274 = sadd.s32 %s273, 1
      %s275 = scalar_select %p272, %s273, %s274
      %p278 = pneg %p272
      %p279 = scmp.eq.s32.totalorder %s27, 1
      %p280 = por %p278, %p279
      %p281 = scmp.ne.s32.totalorder %s273, %s276
      %p282 = scmp.eq.s32.totalorder %s27, 0
      %p283 = por %p281, %p282
      %p284 = scmp.ne.s32.totalorder %s273, %s276
      %p285 = scmp.eq.s32.totalorder %s32, 1
      %p286 = por %p284, %p285
      %p287 = scmp.ne.s32.totalorder %s276, %s277
      %p288 = scmp.eq.s32.totalorder %s32, 0
      %p289 = por %p287, %p288
      %p290 = scmp.ne.s32.totalorder %s276, %s277
      %p291 = scmp.eq.s32.totalorder %s33, 1
      %p292 = por %p290, %p291
      %p294 = scmp.ne.s32.totalorder %s277, %s293
      %p295 = scmp.eq.s32.totalorder %s33, 0
      %p296 = por %p294, %p295
      %p297 = scmp.le.s32.totalorder 1, %s27
      %p298 = scmp.lt.s32.totalorder %s27, 3
      %p299 = pnand %p297, %p298
      %p300 = pneg %p299
      // Predicated region
      $region9: #{tpu_custom_call.1} parent=5 // pred_check
        _
      $region10: #{tpu_custom_call.1} parent=5 // pred_check_branch
        %302 = sbr.rel (%p299) target = $region12
      $region11: #{tpu_custom_call.1} parent=5 // pred_region
        %s303 = ssub.s32 %s27, 1
        // Predicated region
        $region13: #{tpu_custom_call.1} parent=11 // pred_check
          %p304 = pneg %p48
        $region14: #{tpu_custom_call.1} parent=11 // pred_check_branch
          %306 = sbr.rel (%p304) target = $region16
        $region15: #{tpu_custom_call.1} parent=11 // pred_region
          %s308 = ssub.s32 16, 16
          %309 = vsyncadd [#allocation5], %s308
          %312 = dma.hbm_to_smem %s0, 16, [#allocation2], [#allocation5]
        $region16: #{tpu_custom_call.1} parent=11 // pred_fallthru
          _
        // Predicated region
        $region17: #{tpu_custom_call.1} parent=11 // pred_check
          %p313 = pneg %p95
        $region18: #{tpu_custom_call.1} parent=11 // pred_check_branch
          %315 = sbr.rel (%p313) target = $region20
        $region19: #{tpu_custom_call.1} parent=11 // pred_region
          %s317 = ssub.s32 1152, 1152
          %318 = vsyncadd [#allocation8], %s317
          %s319 = sshll.u32 [#allocation7], 4
          %s320 = int_to_ptr.vmem [resolvable:$true] %s319
          %325 = dma.hbm_to_vmem [thread:$0]  %s2, 1152, %s320, [#allocation8], 64, 64, 4
        $region20: #{tpu_custom_call.1} parent=11 // pred_fallthru
          _
        // Predicated region
        $region21: #{tpu_custom_call.1} parent=11 // pred_check
          %p326 = pneg %p116
        $region22: #{tpu_custom_call.1} parent=11 // pred_check_branch
          %328 = sbr.rel (%p326) target = $region24
        $region23: #{tpu_custom_call.1} parent=11 // pred_region
          %s330 = ssub.s32 1024, 1024
          %331 = vsyncadd [#allocation8], %s330
          %s332 = sshll.u32 [#allocation9], 4
          %s333 = int_to_ptr.vmem [resolvable:$true] %s332
          %338 = dma.hbm_to_vmem [thread:$0]  %s3, 1024, %s333, [#allocation8], 64, 64, 4
        $region24: #{tpu_custom_call.1} parent=11 // pred_fallthru
          _
        // Predicated region
        $region25: #{tpu_custom_call.1} parent=11 // pred_check
          %p339 = pneg %p137
        $region26: #{tpu_custom_call.1} parent=11 // pred_check_branch
          %341 = sbr.rel (%p339) target = $region28
        $region27: #{tpu_custom_call.1} parent=11 // pred_region
          %s343 = ssub.s32 9216, 9216
          %344 = vsyncadd [#allocation11], %s343
          %s345 = sshll.u32 [#allocation10], 4
          %s346 = int_to_ptr.vmem [resolvable:$true] %s345
          %351 = dma.hbm_to_vmem [thread:$0]  %s4, 9216, %s346, [#allocation11], 64, 64, 4
        $region28: #{tpu_custom_call.1} parent=11 // pred_fallthru
          _
        // Predicated region
        $region29: #{tpu_custom_call.1} parent=11 // pred_check
          %p352 = pneg %p158
        $region30: #{tpu_custom_call.1} parent=11 // pred_check_branch
          %354 = sbr.rel (%p352) target = $region32
        $region31: #{tpu_custom_call.1} parent=11 // pred_region
          %s356 = ssub.s32 1024, 1024
          %357 = vsyncadd [#allocation11], %s356
          %s358 = sshll.u32 [#allocation12], 4
          %s359 = int_to_ptr.vmem [resolvable:$true] %s358
          %364 = dma.hbm_to_vmem [thread:$0]  %s5, 1024, %s359, [#allocation11], 64, 64, 4
        $region32: #{tpu_custom_call.1} parent=11 // pred_fallthru
          _
        // Predicated region
        $region33: #{tpu_custom_call.1} parent=11 // pred_check
          %p365 = pneg %p179
        $region34: #{tpu_custom_call.1} parent=11 // pred_check_branch
          %367 = sbr.rel (%p365) target = $region36
        $region35: #{tpu_custom_call.1} parent=11 // pred_region
          _
        $region36: #{tpu_custom_call.1} parent=11 // pred_fallthru
          _
        // Predicated region
        $region37: #{tpu_custom_call.1} parent=11 // pred_check
          %p368 = pneg %p200
        $region38: #{tpu_custom_call.1} parent=11 // pred_check_branch
          %370 = sbr.rel (%p368) target = $region40
        $region39: #{tpu_custom_call.1} parent=11 // pred_region
          _
        $region40: #{tpu_custom_call.1} parent=11 // pred_fallthru
          _
        // Predicated region
        $region41: #{tpu_custom_call.1} parent=11 // pred_check
          %p371 = pneg %p221
        $region42: #{tpu_custom_call.1} parent=11 // pred_check_branch
          %373 = sbr.rel (%p371) target = $region44
        $region43: #{tpu_custom_call.1} parent=11 // pred_region
          _
        $region44: #{tpu_custom_call.1} parent=11 // pred_fallthru
          _
        // Predicated region
        $region45: #{tpu_custom_call.1} parent=11 // pred_check
          %p374 = pneg %p242
        $region46: #{tpu_custom_call.1} parent=11 // pred_check_branch
          %376 = sbr.rel (%p374) target = $region48
        $region47: #{tpu_custom_call.1} parent=11 // pred_region
          %s378 = ssub.s32 1024, 1024
          %379 = vsyncadd [#allocation14], %s378
          %s380 = sshll.u32 [#allocation13], 4
          %s381 = int_to_ptr.vmem [resolvable:$true] %s380
          %386 = dma.hbm_to_vmem [thread:$0]  %s9, 1024, %s381, [#allocation14], 64, 64, 4
        $region48: #{tpu_custom_call.1} parent=11 // pred_fallthru
          _
        // Predicated region
        $region49: #{tpu_custom_call.1} parent=11 // pred_check
          %p387 = pneg %p263
        $region50: #{tpu_custom_call.1} parent=11 // pred_check_branch
          %389 = sbr.rel (%p387) target = $region52
        $region51: #{tpu_custom_call.1} parent=11 // pred_region
          _
        $region52: #{tpu_custom_call.1} parent=11 // pred_fallthru
          _
      $region12: #{tpu_custom_call.1} parent=5 // pred_fallthru
        _
      %p390 = scmp.lt.s32.totalorder %s27, 2
      // Predicated region
      $region53: #{tpu_custom_call.1} parent=5 // pred_check
        %p391 = pneg %p390
      $region54: #{tpu_custom_call.1} parent=5 // pred_check_branch
        %393 = sbr.rel (%p391) target = $region56
      $region55: #{tpu_custom_call.1} parent=5 // pred_region
        // Predicated region
        $region57: #{tpu_custom_call.1} parent=55 // pred_check
          %p394 = pneg %p68
        $region58: #{tpu_custom_call.1} parent=55 // pred_check_branch
          %396 = sbr.rel (%p394) target = $region60
        $region59: #{tpu_custom_call.1} parent=55 // pred_region
          %s397 = sand.u32 %s58, 1
          %s398 = scalar_lea.sflag [#allocation3], %s397
          %s399 = sand.u32 %s58, 1
          %s400 = smul.addr %s399, 64
          %s401 = scalar_lea.vmem [#allocation6], %s400
          %s403 = ssub.s32 1024, 1024
          %404 = vsyncadd %s398, %s403
          %s405 = smul.addr %s27, 8
          %s406 = smul.addr %s405, 128
          %s407 = scalar_lea.hbm %s1, %s406
          %s408 = sshll.u32 %s401, 4
          %s409 = int_to_ptr.vmem [resolvable:$true] %s408
          %414 = dma.hbm_to_vmem [thread:$0]  %s407, 1024, %s409, %s398, 128, 128, 8
        $region60: #{tpu_custom_call.1} parent=55 // pred_fallthru
          _
      $region56: #{tpu_custom_call.1} parent=5 // pred_fallthru
        _
      %p415 = scmp.le.s32.totalorder 1, %s27
      %p416 = scmp.lt.s32.totalorder %s27, 3
      %p417 = pnand %p415, %p416
      %p418 = pneg %p417
      // Predicated region
      $region61: #{tpu_custom_call.1} parent=5 // pred_check
        _
      $region62: #{tpu_custom_call.1} parent=5 // pred_check_branch
        %420 = sbr.rel (%p417) target = $region64
      $region63: #{tpu_custom_call.1} parent=5 // pred_region
        %s421 = ssub.s32 %s27, 1
        // Predicated region
        $region65: #{tpu_custom_call.1} parent=63 // pred_check
          %p422 = pneg %p48
        $region66: #{tpu_custom_call.1} parent=63 // pred_check_branch
          %424 = sbr.rel (%p422) target = $region68
        $region67: #{tpu_custom_call.1} parent=63 // pred_region
          %425 = dma.done [#allocation5], 16
        $region68: #{tpu_custom_call.1} parent=63 // pred_fallthru
          _
        %s426 = sand.u32 %s61, 1
        %s427 = scalar_lea.sflag [#allocation3], %s426
        %s428 = sand.u32 %s61, 1
        %s429 = smul.addr %s428, 64
        %s430 = scalar_lea.vmem [#allocation6], %s429
        // Predicated region
        $region69: #{tpu_custom_call.1} parent=63 // pred_check
          %p431 = pneg %p74
        $region70: #{tpu_custom_call.1} parent=63 // pred_check_branch
          %433 = sbr.rel (%p431) target = $region72
        $region71: #{tpu_custom_call.1} parent=63 // pred_region
          %434 = dma.done %s427, 1024
        $region72: #{tpu_custom_call.1} parent=63 // pred_fallthru
          _
        // Predicated region
        $region73: #{tpu_custom_call.1} parent=63 // pred_check
          %p435 = pneg %p95
        $region74: #{tpu_custom_call.1} parent=63 // pred_check_branch
          %437 = sbr.rel (%p435) target = $region76
        $region75: #{tpu_custom_call.1} parent=63 // pred_region
          %438 = dma.done [#allocation8], 1152
        $region76: #{tpu_custom_call.1} parent=63 // pred_fallthru
          _
        // Predicated region
        $region77: #{tpu_custom_call.1} parent=63 // pred_check
          %p439 = pneg %p116
        $region78: #{tpu_custom_call.1} parent=63 // pred_check_branch
          %441 = sbr.rel (%p439) target = $region80
        $region79: #{tpu_custom_call.1} parent=63 // pred_region
          %442 = dma.done [#allocation8], 1024
        $region80: #{tpu_custom_call.1} parent=63 // pred_fallthru
          _
        // Predicated region
        $region81: #{tpu_custom_call.1} parent=63 // pred_check
          %p443 = pneg %p137
        $region82: #{tpu_custom_call.1} parent=63 // pred_check_branch
          %445 = sbr.rel (%p443) target = $region84
        $region83: #{tpu_custom_call.1} parent=63 // pred_region
          %446 = dma.done [#allocation11], 9216
        $region84: #{tpu_custom_call.1} parent=63 // pred_fallthru
          _
        // Predicated region
        $region85: #{tpu_custom_call.1} parent=63 // pred_check
          %p447 = pneg %p158
        $region86: #{tpu_custom_call.1} parent=63 // pred_check_branch
          %449 = sbr.rel (%p447) target = $region88
        $region87: #{tpu_custom_call.1} parent=63 // pred_region
          %450 = dma.done [#allocation11], 1024
        $region88: #{tpu_custom_call.1} parent=63 // pred_fallthru
          _
        // Predicated region
        $region89: #{tpu_custom_call.1} parent=63 // pred_check
          %p451 = pneg %p242
        $region90: #{tpu_custom_call.1} parent=63 // pred_check_branch
          %453 = sbr.rel (%p451) target = $region92
        $region91: #{tpu_custom_call.1} parent=63 // pred_region
          %454 = dma.done [#allocation14], 1024
        $region92: #{tpu_custom_call.1} parent=63 // pred_fallthru
          _
        %455 = sfence
        %p456 = pneg %p48
        %p457 = pneg %p45
        %s458 = sand.u32 %s61, 1
        %s459 = scalar_lea.sflag [#allocation3], %s458
        %s460 = sand.u32 %s61, 1
        %s461 = smul.addr %s460, 64
        %s462 = scalar_lea.vmem [#allocation6], %s461
        %p463 = pneg %p74
        %p464 = pneg %p71
        %p465 = pneg %p95
        %p466 = pneg %p92
        %p467 = pneg %p116
        %p468 = pneg %p113
        %p469 = pneg %p137
        %p470 = pneg %p134
        %p471 = pneg %p158
        %p472 = pneg %p155
        %p473 = pneg %p179
        %p474 = pneg %p176
        %p475 = pneg %p200
        %p476 = pneg %p197
        %p477 = pneg %p221
        %p478 = pneg %p218
        %p479 = pneg %p242
        %p480 = pneg %p239
        %p481 = pneg %p263
        %p482 = pneg %p260
        %p483 = pneg %p289
        %p484 = pneg %p286
        %s485 = sand.u32 %s276, 1
        %s486 = scalar_lea.sflag [#allocation4], %s485
        %s487 = sand.u32 %s276, 1
        %s488 = smul.addr %s487, 16
        %s489 = scalar_lea.vmem [#allocation15], %s488
        %s491 = sld [smem:[#allocation2]]
        %v492 = vld [vmem:[%s430] sm:$0xff]
        %v493 = vld [vmem:[%s430 + $0x8] sm:$0xff]
        %v494 = vld [vmem:[%s430 + $0x10] sm:$0xff]
        %v495 = vld [vmem:[%s430 + $0x18] sm:$0xff]
        %v496 = vld [vmem:[%s430 + $0x20] sm:$0xff]
        %v497 = vld [vmem:[%s430 + $0x28] sm:$0xff]
        %v498 = vld [vmem:[%s430 + $0x30] sm:$0xff]
        %v499 = vld [vmem:[%s430 + $0x38] sm:$0xff]
        %v500 = vpack.c.bf16 %v493, %v492
        %v501 = vpack.c.bf16 %v495, %v494
        %v502 = vpack.c.bf16 %v497, %v496
        %v503 = vpack.c.bf16 %v499, %v498
        %v504 = vld [vmem:[#allocation9] sm:$0xf]
        %v505 = vld [vmem:[#allocation9 + $0x4] sm:$0xf]
        %v506 = vld [vmem:[#allocation9 + $0x8] sm:$0xf]
        %v507 = vld [vmem:[#allocation9 + $0xc] sm:$0xf]
        %v508 = vld [vmem:[#allocation9 + $0x10] sm:$0xf]
        %v509 = vld [vmem:[#allocation9 + $0x14] sm:$0xf]
        %v510 = vld [vmem:[#allocation9 + $0x18] sm:$0xf]
        %v511 = vld [vmem:[#allocation9 + $0x1c] sm:$0xf]
        %v512 = vld [vmem:[#allocation9 + $0x20] sm:$0xf]
        %v513 = vld [vmem:[#allocation9 + $0x24] sm:$0xf]
        %v514 = vld [vmem:[#allocation9 + $0x28] sm:$0xf]
        %v515 = vld [vmem:[#allocation9 + $0x2c] sm:$0xf]
        %v516 = vld [vmem:[#allocation9 + $0x30] sm:$0xf]
        %v517 = vld [vmem:[#allocation9 + $0x34] sm:$0xf]
        %v518 = vld [vmem:[#allocation9 + $0x38] sm:$0xf]
        %v519 = vld [vmem:[#allocation9 + $0x3c] sm:$0xf]
        %v520 = vld [vmem:[%s6] sm:$0x1]
        %v522 = vlaneseq
        %v523 = vshrl.u32 %v522, 7
        %v524 = vsub.s32 0, %v523
        %v525 = vrot.slane %v520, %v524
        %v543 = vunpack.c.l.b16 %v504
        %v544 = vunpack.c.l.b16 %v505
        %v545 = vunpack.c.l.b16 %v506
        %v546 = vunpack.c.l.b16 %v507
        %v547 = vunpack.c.l.b16 %v508
        %v548 = vunpack.c.l.b16 %v509
        %v549 = vunpack.c.l.b16 %v510
        %v550 = vunpack.c.l.b16 %v511
        %v551 = vunpack.c.l.b16 %v512
        %v552 = vunpack.c.l.b16 %v513
        %v553 = vunpack.c.l.b16 %v514
        %v554 = vunpack.c.l.b16 %v515
        %v555 = vunpack.c.l.b16 %v516
        %v556 = vunpack.c.l.b16 %v517
        %v557 = vunpack.c.l.b16 %v518
        %v558 = vunpack.c.l.b16 %v519
        %v559 = vpack.c.b16 %v544, %v543
        %v560 = vpack.c.b16 %v546, %v545
        %v561 = vpack.c.b16 %v548, %v547
        %v562 = vpack.c.b16 %v550, %v549
        %v563 = vpack.c.b16 %v552, %v551
        %v564 = vpack.c.b16 %v554, %v553
        %v565 = vpack.c.b16 %v556, %v555
        %v566 = vpack.c.b16 %v558, %v557
        %575 = vmatprep.subr.bf16.mxu0 0
        %576 = vmatpush1.bf16.msra.mxu0 %v566
        %577 = vmatprep.subr.bf16.mxu0 0
        %578 = vmatpush1.bf16.msra.mxu0 %v565
        %579 = vmatprep.subr.bf16.mxu0 0
        %580 = vmatpush1.bf16.msra.mxu0 %v564
        %581 = vmatprep.subr.bf16.mxu0 0
        %582 = vmatpush1.bf16.msra.mxu0 %v563
        %583 = vmatprep.subr.bf16.mxu0 0
        %584 = vmatpush1.bf16.msra.mxu0 %v562
        %585 = vmatprep.subr.bf16.mxu0 0
        %586 = vmatpush1.bf16.msra.mxu0 %v561
        %587 = vmatprep.subr.bf16.mxu0 0
        %588 = vmatpush1.bf16.msra.mxu0 %v560
        %589 = vmatprep.subr.bf16.mxu0 0
        %590 = vmatpush1.bf16.msra.mxu0 %v559
        %591 = vmatprep.subr.bf16.mxu0 0
        %592 = vmatpush2.bf16.msra.mxu0 0
        %593 = vmatprep.subr.bf16.mxu0 0
        %594 = vmatpush2.bf16.msra.mxu0 0
        %595 = vmatprep.subr.bf16.mxu0 0
        %596 = vmatpush2.bf16.msra.mxu0 0
        %597 = vmatprep.subr.bf16.mxu0 0
        %598 = vmatpush2.bf16.msra.mxu0 0
        %599 = vmatprep.subr.bf16.mxu0 0
        %600 = vmatpush2.bf16.msra.mxu0 0
        %601 = vmatprep.subr.bf16.mxu0 0
        %602 = vmatpush2.bf16.msra.mxu0 0
        %603 = vmatprep.subr.bf16.mxu0 0
        %604 = vmatpush2.bf16.msra.mxu0 0
        %605 = vmatprep.subr.bf16.mxu0 0
        %606 = vmatpush2.bf16.msra.mxu0 0
        %607 = vmatprep.mubr.bf16.mxu0 0
        %608 = vmatmul.mubr.bf16.gmra.mxu0 %v500
        %v609 = vpop.f32.mrf.mxu0
        %v610 = vadd.f32 %v525, %v609
        %v611 = vpop.f32.mrf.mxu0
        %v612 = vpop.f32.mrf.mxu0
        %v613 = vadd.f32 %v525, %v612
        %v614 = vpop.f32.mrf.mxu0
        %615 = vmatprep.mubr.bf16.mxu0 0
        %616 = vmatmul.mubr.bf16.gmra.mxu0 %v501
        %v617 = vpop.f32.mrf.mxu0
        %v618 = vadd.f32 %v525, %v617
        %v619 = vpop.f32.mrf.mxu0
        %v620 = vpop.f32.mrf.mxu0
        %v621 = vadd.f32 %v525, %v620
        %v622 = vpop.f32.mrf.mxu0
        %623 = vmatprep.mubr.bf16.mxu0 0
        %624 = vmatmul.mubr.bf16.gmra.mxu0 %v502
        %v625 = vpop.f32.mrf.mxu0
        %v626 = vadd.f32 %v525, %v625
        %v627 = vpop.f32.mrf.mxu0
        %v628 = vpop.f32.mrf.mxu0
        %v629 = vadd.f32 %v525, %v628
        %v630 = vpop.f32.mrf.mxu0
        %631 = vmatprep.mubr.bf16.mxu0 0
        %632 = vmatmul.mubr.bf16.gmra.mxu0 %v503
        %v633 = vpop.f32.mrf.mxu0
        %v634 = vadd.f32 %v525, %v633
        %v635 = vpop.f32.mrf.mxu0
        %v636 = vpop.f32.mrf.mxu0
        %v637 = vadd.f32 %v525, %v636
        %v638 = vpop.f32.mrf.mxu0
        %639 = vdwg.mxu0
        %v640 = vmax.f32 %v610, 0.0
        %v641 = vmax.f32 %v613, 0.0
        %v642 = vmax.f32 %v618, 0.0
        %v643 = vmax.f32 %v621, 0.0
        %v644 = vmax.f32 %v626, 0.0
        %v645 = vmax.f32 %v629, 0.0
        %v646 = vmax.f32 %v634, 0.0
        %v647 = vmax.f32 %v637, 0.0
        %v648 = vpack.c.bf16 %v641, %v640
        %v649 = vpack.c.bf16 %v643, %v642
        %v650 = vpack.c.bf16 %v645, %v644
        %v651 = vpack.c.bf16 %v647, %v646
        %v652 = vld [vmem:[#allocation7] sm:$0xf]
        %v653 = vld [vmem:[#allocation7 + $0x4] sm:$0xf]
        %v656 = vunpack.c.l.b16 %v652
        %v657 = vunpack.c.l.b16 %v653
        %v658 = vpack.c.b16 %v657, %v656
        %vm659 = vcmask 523264
        %v661 = vsel %vm659, %v658, 0
        %663 = vmatprep.subr.bf16.mxu0 0
        %664 = vmatpush1.bf16.msra.mxu0 0
        %665 = vmatprep.subr.bf16.mxu0 0
        %666 = vmatpush1.bf16.msra.mxu0 0
        %667 = vmatprep.subr.bf16.mxu0 0
        %668 = vmatpush1.bf16.msra.mxu0 0
        %669 = vmatprep.subr.bf16.mxu0 0
        %670 = vmatpush1.bf16.msra.mxu0 0
        %671 = vmatprep.subr.bf16.mxu0 0
        %672 = vmatpush1.bf16.msra.mxu0 %v651
        %673 = vmatprep.subr.bf16.mxu0 0
        %674 = vmatpush1.bf16.msra.mxu0 %v650
        %675 = vmatprep.subr.bf16.mxu0 0
        %676 = vmatpush1.bf16.msra.mxu0 %v649
        %677 = vmatprep.subr.bf16.mxu0 0
        %678 = vmatpush1.bf16.msra.mxu0 %v648
        %679 = vmatprep.subr.bf16.mxu0 0
        %680 = vmatpush2.bf16.msra.mxu0 0
        %681 = vmatprep.subr.bf16.mxu0 0
        %682 = vmatpush2.bf16.msra.mxu0 0
        %683 = vmatprep.subr.bf16.mxu0 0
        %684 = vmatpush2.bf16.msra.mxu0 0
        %685 = vmatprep.subr.bf16.mxu0 0
        %686 = vmatpush2.bf16.msra.mxu0 0
        %687 = vmatprep.subr.bf16.mxu0 0
        %688 = vmatpush2.bf16.msra.mxu0 0
        %689 = vmatprep.subr.bf16.mxu0 0
        %690 = vmatpush2.bf16.msra.mxu0 0
        %691 = vmatprep.subr.bf16.mxu0 0
        %692 = vmatpush2.bf16.msra.mxu0 0
        %693 = vmatprep.subr.bf16.mxu0 0
        %694 = vmatpush2.bf16.msra.mxu0 0
        %695 = vmatprep.mubr.bf16.mxu0 0
        %696 = vmatmul.mubr.bf16.gmra.mxu0 %v661
        %v697 = vpop.f32.mrf.mxu0
        %v698 = vadd.f32 0.0, %v697
        %v699 = vpop.f32.mrf.mxu0
        %v700 = vpop.f32.mrf.mxu0
        %v701 = vadd.f32 0.0, %v700
        %v702 = vpop.f32.mrf.mxu0
        %703 = vdwg.mxu0
        %v704 = vpack.c.bf16 %v701, %v698
        %v705 = vld [vmem:[#allocation10] sm:$0xf]
        %v706 = vld [vmem:[#allocation10 + $0x4] sm:$0xf]
        %v707 = vld [vmem:[#allocation10 + $0x8] sm:$0xf]
        %v708 = vld [vmem:[#allocation10 + $0xc] sm:$0xf]
        %v709 = vld [vmem:[#allocation10 + $0x10] sm:$0xf]
        %v710 = vld [vmem:[#allocation10 + $0x14] sm:$0xf]
        %v711 = vld [vmem:[#allocation10 + $0x18] sm:$0xf]
        %v712 = vld [vmem:[#allocation10 + $0x1c] sm:$0xf]
        %v713 = vld [vmem:[#allocation10 + $0x20] sm:$0xf]
        %v714 = vld [vmem:[#allocation10 + $0x24] sm:$0xf]
        %v715 = vld [vmem:[#allocation10 + $0x28] sm:$0xf]
        %v716 = vld [vmem:[#allocation10 + $0x2c] sm:$0xf]
        %v717 = vld [vmem:[#allocation10 + $0x30] sm:$0xf]
        %v718 = vld [vmem:[#allocation10 + $0x34] sm:$0xf]
        %v719 = vld [vmem:[#allocation10 + $0x38] sm:$0xf]
        %v720 = vld [vmem:[#allocation10 + $0x3c] sm:$0xf]
        %s721 = scalar_lea.vmem [#allocation7], 8
        %v722 = vld [vmem:[%s721] sm:$0xf]
        %v723 = vld [vmem:[%s721 + $0x4] sm:$0xf]
        %v726 = vunpack.c.l.b16 %v722
        %v727 = vunpack.c.l.b16 %v723
        %v728 = vpack.c.b16 %v727, %v726
        %v730 = vsel %vm659, %v728, 0
        %732 = vmatprep.subr.bf16.mxu0 0
        %733 = vmatpush1.bf16.msra.mxu0 0
        %734 = vmatprep.subr.bf16.mxu0 0
        %735 = vmatpush1.bf16.msra.mxu0 0
        %736 = vmatprep.subr.bf16.mxu0 0
        %737 = vmatpush1.bf16.msra.mxu0 0
        %738 = vmatprep.subr.bf16.mxu0 0
        %739 = vmatpush1.bf16.msra.mxu0 0
        %740 = vmatprep.subr.bf16.mxu0 0
        %741 = vmatpush1.bf16.msra.mxu0 %v651
        %742 = vmatprep.subr.bf16.mxu0 0
        %743 = vmatpush1.bf16.msra.mxu0 %v650
        %744 = vmatprep.subr.bf16.mxu0 0
        %745 = vmatpush1.bf16.msra.mxu0 %v649
        %746 = vmatprep.subr.bf16.mxu0 0
        %747 = vmatpush1.bf16.msra.mxu0 %v648
        %748 = vmatprep.subr.bf16.mxu0 0
        %749 = vmatpush2.bf16.msra.mxu0 0
        %750 = vmatprep.subr.bf16.mxu0 0
        %751 = vmatpush2.bf16.msra.mxu0 0
        %752 = vmatprep.subr.bf16.mxu0 0
        %753 = vmatpush2.bf16.msra.mxu0 0
        %754 = vmatprep.subr.bf16.mxu0 0
        %755 = vmatpush2.bf16.msra.mxu0 0
        %756 = vmatprep.subr.bf16.mxu0 0
        %757 = vmatpush2.bf16.msra.mxu0 0
        %758 = vmatprep.subr.bf16.mxu0 0
        %759 = vmatpush2.bf16.msra.mxu0 0
        %760 = vmatprep.subr.bf16.mxu0 0
        %761 = vmatpush2.bf16.msra.mxu0 0
        %762 = vmatprep.subr.bf16.mxu0 0
        %763 = vmatpush2.bf16.msra.mxu0 0
        %764 = vmatprep.mubr.bf16.mxu0 0
        %765 = vmatmul.mubr.bf16.gmra.mxu0 %v730
        %v766 = vpop.f32.mrf.mxu0
        %v767 = vadd.f32 0.0, %v766
        %v768 = vpop.f32.mrf.mxu0
        %v769 = vpop.f32.mrf.mxu0
        %v770 = vadd.f32 0.0, %v769
        %v771 = vpop.f32.mrf.mxu0
        %772 = vdwg.mxu0
        %v773 = vpack.c.bf16 %v770, %v767
        %s774 = scalar_lea.vmem [#allocation10], 64
        %v775 = vld [vmem:[%s774] sm:$0xf]
        %v776 = vld [vmem:[%s774 + $0x4] sm:$0xf]
        %v777 = vld [vmem:[%s774 + $0x8] sm:$0xf]
        %v778 = vld [vmem:[%s774 + $0xc] sm:$0xf]
        %v779 = vld [vmem:[%s774 + $0x10] sm:$0xf]
        %v780 = vld [vmem:[%s774 + $0x14] sm:$0xf]
        %v781 = vld [vmem:[%s774 + $0x18] sm:$0xf]
        %v782 = vld [vmem:[%s774 + $0x1c] sm:$0xf]
        %v783 = vld [vmem:[%s774 + $0x20] sm:$0xf]
        %v784 = vld [vmem:[%s774 + $0x24] sm:$0xf]
        %v785 = vld [vmem:[%s774 + $0x28] sm:$0xf]
        %v786 = vld [vmem:[%s774 + $0x2c] sm:$0xf]
        %v787 = vld [vmem:[%s774 + $0x30] sm:$0xf]
        %v788 = vld [vmem:[%s774 + $0x34] sm:$0xf]
        %v789 = vld [vmem:[%s774 + $0x38] sm:$0xf]
        %v790 = vld [vmem:[%s774 + $0x3c] sm:$0xf]
        %v807 = vunpack.c.l.b16 %v775
        %v808 = vunpack.c.l.b16 %v776
        %v809 = vunpack.c.l.b16 %v777
        %v810 = vunpack.c.l.b16 %v778
        %v811 = vunpack.c.l.b16 %v779
        %v812 = vunpack.c.l.b16 %v780
        %v813 = vunpack.c.l.b16 %v781
        %v814 = vunpack.c.l.b16 %v782
        %v815 = vunpack.c.l.b16 %v783
        %v816 = vunpack.c.l.b16 %v784
        %v817 = vunpack.c.l.b16 %v785
        %v818 = vunpack.c.l.b16 %v786
        %v819 = vunpack.c.l.b16 %v787
        %v820 = vunpack.c.l.b16 %v788
        %v821 = vunpack.c.l.b16 %v789
        %v822 = vunpack.c.l.b16 %v790
        %v823 = vpack.c.b16 %v808, %v807
        %v824 = vpack.c.b16 %v810, %v809
        %v825 = vpack.c.b16 %v812, %v811
        %v826 = vpack.c.b16 %v814, %v813
        %v827 = vpack.c.b16 %v816, %v815
        %v828 = vpack.c.b16 %v818, %v817
        %v829 = vpack.c.b16 %v820, %v819
        %v830 = vpack.c.b16 %v822, %v821
        %839 = vmatprep.subr.bf16.mxu0 0
        %840 = vmatpush1.bf16.msra.mxu0 %v830
        %841 = vmatprep.subr.bf16.mxu0 0
        %842 = vmatpush1.bf16.msra.mxu0 %v829
        %843 = vmatprep.subr.bf16.mxu0 0
        %844 = vmatpush1.bf16.msra.mxu0 %v828
        %845 = vmatprep.subr.bf16.mxu0 0
        %846 = vmatpush1.bf16.msra.mxu0 %v827
        %847 = vmatprep.subr.bf16.mxu0 0
        %848 = vmatpush1.bf16.msra.mxu0 %v826
        %849 = vmatprep.subr.bf16.mxu0 0
        %850 = vmatpush1.bf16.msra.mxu0 %v825
        %851 = vmatprep.subr.bf16.mxu0 0
        %852 = vmatpush1.bf16.msra.mxu0 %v824
        %853 = vmatprep.subr.bf16.mxu0 0
        %854 = vmatpush1.bf16.msra.mxu0 %v823
        %855 = vmatprep.subr.bf16.mxu0 0
        %856 = vmatpush2.bf16.msra.mxu0 0
        %857 = vmatprep.subr.bf16.mxu0 0
        %858 = vmatpush2.bf16.msra.mxu0 0
        %859 = vmatprep.subr.bf16.mxu0 0
        %860 = vmatpush2.bf16.msra.mxu0 0
        %861 = vmatprep.subr.bf16.mxu0 0
        %862 = vmatpush2.bf16.msra.mxu0 0
        %863 = vmatprep.subr.bf16.mxu0 0
        %864 = vmatpush2.bf16.msra.mxu0 0
        %865 = vmatprep.subr.bf16.mxu0 0
        %866 = vmatpush2.bf16.msra.mxu0 0
        %867 = vmatprep.subr.bf16.mxu0 0
        %868 = vmatpush2.bf16.msra.mxu0 0
        %869 = vmatprep.subr.bf16.mxu0 0
        %870 = vmatpush2.bf16.msra.mxu0 0
        %871 = vmatprep.mubr.bf16.mxu0 0
        %872 = vmatmul.mubr.bf16.gmra.mxu0 %v773
        %v873 = vpop.f32.mrf.mxu0
        %v874 = vadd.f32 0.0, %v873
        %v875 = vpop.f32.mrf.mxu0
        %v876 = vpop.f32.mrf.mxu0
        %v877 = vadd.f32 0.0, %v876
        %v878 = vpop.f32.mrf.mxu0
        %879 = vdwg.mxu0
        %v896 = vunpack.c.l.b16 %v705
        %v897 = vunpack.c.l.b16 %v706
        %v898 = vunpack.c.l.b16 %v707
        %v899 = vunpack.c.l.b16 %v708
        %v900 = vunpack.c.l.b16 %v709
        %v901 = vunpack.c.l.b16 %v710
        %v902 = vunpack.c.l.b16 %v711
        %v903 = vunpack.c.l.b16 %v712
        %v904 = vunpack.c.l.b16 %v713
        %v905 = vunpack.c.l.b16 %v714
        %v906 = vunpack.c.l.b16 %v715
        %v907 = vunpack.c.l.b16 %v716
        %v908 = vunpack.c.l.b16 %v717
        %v909 = vunpack.c.l.b16 %v718
        %v910 = vunpack.c.l.b16 %v719
        %v911 = vunpack.c.l.b16 %v720
        %v912 = vpack.c.b16 %v897, %v896
        %v913 = vpack.c.b16 %v899, %v898
        %v914 = vpack.c.b16 %v901, %v900
        %v915 = vpack.c.b16 %v903, %v902
        %v916 = vpack.c.b16 %v905, %v904
        %v917 = vpack.c.b16 %v907, %v906
        %v918 = vpack.c.b16 %v909, %v908
        %v919 = vpack.c.b16 %v911, %v910
        %928 = vmatprep.subr.bf16.mxu0 0
        %929 = vmatpush1.bf16.msra.mxu0 %v919
        %930 = vmatprep.subr.bf16.mxu0 0
        %931 = vmatpush1.bf16.msra.mxu0 %v918
        %932 = vmatprep.subr.bf16.mxu0 0
        %933 = vmatpush1.bf16.msra.mxu0 %v917
        %934 = vmatprep.subr.bf16.mxu0 0
        %935 = vmatpush1.bf16.msra.mxu0 %v916
        %936 = vmatprep.subr.bf16.mxu0 0
        %937 = vmatpush1.bf16.msra.mxu0 %v915
        %938 = vmatprep.subr.bf16.mxu0 0
        %939 = vmatpush1.bf16.msra.mxu0 %v914
        %940 = vmatprep.subr.bf16.mxu0 0
        %941 = vmatpush1.bf16.msra.mxu0 %v913
        %942 = vmatprep.subr.bf16.mxu0 0
        %943 = vmatpush1.bf16.msra.mxu0 %v912
        %944 = vmatprep.subr.bf16.mxu0 0
        %945 = vmatpush2.bf16.msra.mxu0 0
        %946 = vmatprep.subr.bf16.mxu0 0
        %947 = vmatpush2.bf16.msra.mxu0 0
        %948 = vmatprep.subr.bf16.mxu0 0
        %949 = vmatpush2.bf16.msra.mxu0 0
        %950 = vmatprep.subr.bf16.mxu0 0
        %951 = vmatpush2.bf16.msra.mxu0 0
        %952 = vmatprep.subr.bf16.mxu0 0
        %953 = vmatpush2.bf16.msra.mxu0 0
        %954 = vmatprep.subr.bf16.mxu0 0
        %955 = vmatpush2.bf16.msra.mxu0 0
        %956 = vmatprep.subr.bf16.mxu0 0
        %957 = vmatpush2.bf16.msra.mxu0 0
        %958 = vmatprep.subr.bf16.mxu0 0
        %959 = vmatpush2.bf16.msra.mxu0 0
        %960 = vmatprep.mubr.bf16.mxu0 0
        %961 = vmatmul.mubr.bf16.gmra.mxu0 %v704
        %v962 = vpop.f32.mrf.mxu0
        %v963 = vadd.f32 %v874, %v962
        %v964 = vpop.f32.mrf.mxu0
        %v965 = vpop.f32.mrf.mxu0
        %v966 = vadd.f32 %v877, %v965
        %v967 = vpop.f32.mrf.mxu0
        %968 = vdwg.mxu0
        %s969 = scalar_lea.vmem [#allocation7], 16
        %v970 = vld [vmem:[%s969] sm:$0xf]
        %v971 = vld [vmem:[%s969 + $0x4] sm:$0xf]
        %v974 = vunpack.c.l.b16 %v970
        %v975 = vunpack.c.l.b16 %v971
        %v976 = vpack.c.b16 %v975, %v974
        %v978 = vsel %vm659, %v976, 0
        %980 = vmatprep.subr.bf16.mxu0 0
        %981 = vmatpush1.bf16.msra.mxu0 0
        %982 = vmatprep.subr.bf16.mxu0 0
        %983 = vmatpush1.bf16.msra.mxu0 0
        %984 = vmatprep.subr.bf16.mxu0 0
        %985 = vmatpush1.bf16.msra.mxu0 0
        %986 = vmatprep.subr.bf16.mxu0 0
        %987 = vmatpush1.bf16.msra.mxu0 0
        %988 = vmatprep.subr.bf16.mxu0 0
        %989 = vmatpush1.bf16.msra.mxu0 %v651
        %990 = vmatprep.subr.bf16.mxu0 0
        %991 = vmatpush1.bf16.msra.mxu0 %v650
        %992 = vmatprep.subr.bf16.mxu0 0
        %993 = vmatpush1.bf16.msra.mxu0 %v649
        %994 = vmatprep.subr.bf16.mxu0 0
        %995 = vmatpush1.bf16.msra.mxu0 %v648
        %996 = vmatprep.subr.bf16.mxu0 0
        %997 = vmatpush2.bf16.msra.mxu0 0
        %998 = vmatprep.subr.bf16.mxu0 0
        %999 = vmatpush2.bf16.msra.mxu0 0
        %1000 = vmatprep.subr.bf16.mxu0 0
        %1001 = vmatpush2.bf16.msra.mxu0 0
        %1002 = vmatprep.subr.bf16.mxu0 0
        %1003 = vmatpush2.bf16.msra.mxu0 0
        %1004 = vmatprep.subr.bf16.mxu0 0
        %1005 = vmatpush2.bf16.msra.mxu0 0
        %1006 = vmatprep.subr.bf16.mxu0 0
        %1007 = vmatpush2.bf16.msra.mxu0 0
        %1008 = vmatprep.subr.bf16.mxu0 0
        %1009 = vmatpush2.bf16.msra.mxu0 0
        %1010 = vmatprep.subr.bf16.mxu0 0
        %1011 = vmatpush2.bf16.msra.mxu0 0
        %1012 = vmatprep.mubr.bf16.mxu0 0
        %1013 = vmatmul.mubr.bf16.gmra.mxu0 %v978
        %v1014 = vpop.f32.mrf.mxu0
        %v1015 = vadd.f32 0.0, %v1014
        %v1016 = vpop.f32.mrf.mxu0
        %v1017 = vpop.f32.mrf.mxu0
        %v1018 = vadd.f32 0.0, %v1017
        %v1019 = vpop.f32.mrf.mxu0
        %1020 = vdwg.mxu0
        %v1021 = vpack.c.bf16 %v1018, %v1015
        %s1022 = scalar_lea.vmem [#allocation10], 128
        %v1023 = vld [vmem:[%s1022] sm:$0xf]
        %v1024 = vld [vmem:[%s1022 + $0x4] sm:$0xf]
        %v1025 = vld [vmem:[%s1022 + $0x8] sm:$0xf]
        %v1026 = vld [vmem:[%s1022 + $0xc] sm:$0xf]
        %v1027 = vld [vmem:[%s1022 + $0x10] sm:$0xf]
        %v1028 = vld [vmem:[%s1022 + $0x14] sm:$0xf]
        %v1029 = vld [vmem:[%s1022 + $0x18] sm:$0xf]
        %v1030 = vld [vmem:[%s1022 + $0x1c] sm:$0xf]
        %v1031 = vld [vmem:[%s1022 + $0x20] sm:$0xf]
        %v1032 = vld [vmem:[%s1022 + $0x24] sm:$0xf]
        %v1033 = vld [vmem:[%s1022 + $0x28] sm:$0xf]
        %v1034 = vld [vmem:[%s1022 + $0x2c] sm:$0xf]
        %v1035 = vld [vmem:[%s1022 + $0x30] sm:$0xf]
        %v1036 = vld [vmem:[%s1022 + $0x34] sm:$0xf]
        %v1037 = vld [vmem:[%s1022 + $0x38] sm:$0xf]
        %v1038 = vld [vmem:[%s1022 + $0x3c] sm:$0xf]
        %v1055 = vunpack.c.l.b16 %v1023
        %v1056 = vunpack.c.l.b16 %v1024
        %v1057 = vunpack.c.l.b16 %v1025
        %v1058 = vunpack.c.l.b16 %v1026
        %v1059 = vunpack.c.l.b16 %v1027
        %v1060 = vunpack.c.l.b16 %v1028
        %v1061 = vunpack.c.l.b16 %v1029
        %v1062 = vunpack.c.l.b16 %v1030
        %v1063 = vunpack.c.l.b16 %v1031
        %v1064 = vunpack.c.l.b16 %v1032
        %v1065 = vunpack.c.l.b16 %v1033
        %v1066 = vunpack.c.l.b16 %v1034
        %v1067 = vunpack.c.l.b16 %v1035
        %v1068 = vunpack.c.l.b16 %v1036
        %v1069 = vunpack.c.l.b16 %v1037
        %v1070 = vunpack.c.l.b16 %v1038
        %v1071 = vpack.c.b16 %v1056, %v1055
        %v1072 = vpack.c.b16 %v1058, %v1057
        %v1073 = vpack.c.b16 %v1060, %v1059
        %v1074 = vpack.c.b16 %v1062, %v1061
        %v1075 = vpack.c.b16 %v1064, %v1063
        %v1076 = vpack.c.b16 %v1066, %v1065
        %v1077 = vpack.c.b16 %v1068, %v1067
        %v1078 = vpack.c.b16 %v1070, %v1069
        %1087 = vmatprep.subr.bf16.mxu0 0
        %1088 = vmatpush1.bf16.msra.mxu0 %v1078
        %1089 = vmatprep.subr.bf16.mxu0 0
        %1090 = vmatpush1.bf16.msra.mxu0 %v1077
        %1091 = vmatprep.subr.bf16.mxu0 0
        %1092 = vmatpush1.bf16.msra.mxu0 %v1076
        %1093 = vmatprep.subr.bf16.mxu0 0
        %1094 = vmatpush1.bf16.msra.mxu0 %v1075
        %1095 = vmatprep.subr.bf16.mxu0 0
        %1096 = vmatpush1.bf16.msra.mxu0 %v1074
        %1097 = vmatprep.subr.bf16.mxu0 0
        %1098 = vmatpush1.bf16.msra.mxu0 %v1073
        %1099 = vmatprep.subr.bf16.mxu0 0
        %1100 = vmatpush1.bf16.msra.mxu0 %v1072
        %1101 = vmatprep.subr.bf16.mxu0 0
        %1102 = vmatpush1.bf16.msra.mxu0 %v1071
        %1103 = vmatprep.subr.bf16.mxu0 0
        %1104 = vmatpush2.bf16.msra.mxu0 0
        %1105 = vmatprep.subr.bf16.mxu0 0
        %1106 = vmatpush2.bf16.msra.mxu0 0
        %1107 = vmatprep.subr.bf16.mxu0 0
        %1108 = vmatpush2.bf16.msra.mxu0 0
        %1109 = vmatprep.subr.bf16.mxu0 0
        %1110 = vmatpush2.bf16.msra.mxu0 0
        %1111 = vmatprep.subr.bf16.mxu0 0
        %1112 = vmatpush2.bf16.msra.mxu0 0
        %1113 = vmatprep.subr.bf16.mxu0 0
        %1114 = vmatpush2.bf16.msra.mxu0 0
        %1115 = vmatprep.subr.bf16.mxu0 0
        %1116 = vmatpush2.bf16.msra.mxu0 0
        %1117 = vmatprep.subr.bf16.mxu0 0
        %1118 = vmatpush2.bf16.msra.mxu0 0
        %1119 = vmatprep.mubr.bf16.mxu0 0
        %1120 = vmatmul.mubr.bf16.gmra.mxu0 %v1021
        %v1121 = vpop.f32.mrf.mxu0
        %v1122 = vadd.f32 0.0, %v1121
        %v1123 = vpop.f32.mrf.mxu0
        %v1124 = vpop.f32.mrf.mxu0
        %v1125 = vadd.f32 0.0, %v1124
        %v1126 = vpop.f32.mrf.mxu0
        %1127 = vdwg.mxu0
        %v1128 = vadd.f32 %v963, %v1122
        %v1129 = vadd.f32 %v966, %v1125
        %s1130 = scalar_lea.vmem [#allocation7], 24
        %v1131 = vld [vmem:[%s1130] sm:$0xf]
        %v1132 = vld [vmem:[%s1130 + $0x4] sm:$0xf]
        %v1135 = vunpack.c.l.b16 %v1131
        %v1136 = vunpack.c.l.b16 %v1132
        %v1137 = vpack.c.b16 %v1136, %v1135
        %v1139 = vsel %vm659, %v1137, 0
        %1141 = vmatprep.subr.bf16.mxu0 0
        %1142 = vmatpush1.bf16.msra.mxu0 0
        %1143 = vmatprep.subr.bf16.mxu0 0
        %1144 = vmatpush1.bf16.msra.mxu0 0
        %1145 = vmatprep.subr.bf16.mxu0 0
        %1146 = vmatpush1.bf16.msra.mxu0 0
        %1147 = vmatprep.subr.bf16.mxu0 0
        %1148 = vmatpush1.bf16.msra.mxu0 0
        %1149 = vmatprep.subr.bf16.mxu0 0
        %1150 = vmatpush1.bf16.msra.mxu0 %v651
        %1151 = vmatprep.subr.bf16.mxu0 0
        %1152 = vmatpush1.bf16.msra.mxu0 %v650
        %1153 = vmatprep.subr.bf16.mxu0 0
        %1154 = vmatpush1.bf16.msra.mxu0 %v649
        %1155 = vmatprep.subr.bf16.mxu0 0
        %1156 = vmatpush1.bf16.msra.mxu0 %v648
        %1157 = vmatprep.subr.bf16.mxu0 0
        %1158 = vmatpush2.bf16.msra.mxu0 0
        %1159 = vmatprep.subr.bf16.mxu0 0
        %1160 = vmatpush2.bf16.msra.mxu0 0
        %1161 = vmatprep.subr.bf16.mxu0 0
        %1162 = vmatpush2.bf16.msra.mxu0 0
        %1163 = vmatprep.subr.bf16.mxu0 0
        %1164 = vmatpush2.bf16.msra.mxu0 0
        %1165 = vmatprep.subr.bf16.mxu0 0
        %1166 = vmatpush2.bf16.msra.mxu0 0
        %1167 = vmatprep.subr.bf16.mxu0 0
        %1168 = vmatpush2.bf16.msra.mxu0 0
        %1169 = vmatprep.subr.bf16.mxu0 0
        %1170 = vmatpush2.bf16.msra.mxu0 0
        %1171 = vmatprep.subr.bf16.mxu0 0
        %1172 = vmatpush2.bf16.msra.mxu0 0
        %1173 = vmatprep.mubr.bf16.mxu0 0
        %1174 = vmatmul.mubr.bf16.gmra.mxu0 %v1139
        %v1175 = vpop.f32.mrf.mxu0
        %v1176 = vadd.f32 0.0, %v1175
        %v1177 = vpop.f32.mrf.mxu0
        %v1178 = vpop.f32.mrf.mxu0
        %v1179 = vadd.f32 0.0, %v1178
        %v1180 = vpop.f32.mrf.mxu0
        %1181 = vdwg.mxu0
        %v1182 = vpack.c.bf16 %v1179, %v1176
        %s1183 = scalar_lea.vmem [#allocation10], 192
        %v1184 = vld [vmem:[%s1183] sm:$0xf]
        %v1185 = vld [vmem:[%s1183 + $0x4] sm:$0xf]
        %v1186 = vld [vmem:[%s1183 + $0x8] sm:$0xf]
        %v1187 = vld [vmem:[%s1183 + $0xc] sm:$0xf]
        %v1188 = vld [vmem:[%s1183 + $0x10] sm:$0xf]
        %v1189 = vld [vmem:[%s1183 + $0x14] sm:$0xf]
        %v1190 = vld [vmem:[%s1183 + $0x18] sm:$0xf]
        %v1191 = vld [vmem:[%s1183 + $0x1c] sm:$0xf]
        %v1192 = vld [vmem:[%s1183 + $0x20] sm:$0xf]
        %v1193 = vld [vmem:[%s1183 + $0x24] sm:$0xf]
        %v1194 = vld [vmem:[%s1183 + $0x28] sm:$0xf]
        %v1195 = vld [vmem:[%s1183 + $0x2c] sm:$0xf]
        %v1196 = vld [vmem:[%s1183 + $0x30] sm:$0xf]
        %v1197 = vld [vmem:[%s1183 + $0x34] sm:$0xf]
        %v1198 = vld [vmem:[%s1183 + $0x38] sm:$0xf]
        %v1199 = vld [vmem:[%s1183 + $0x3c] sm:$0xf]
        %v1216 = vunpack.c.l.b16 %v1184
        %v1217 = vunpack.c.l.b16 %v1185
        %v1218 = vunpack.c.l.b16 %v1186
        %v1219 = vunpack.c.l.b16 %v1187
        %v1220 = vunpack.c.l.b16 %v1188
        %v1221 = vunpack.c.l.b16 %v1189
        %v1222 = vunpack.c.l.b16 %v1190
        %v1223 = vunpack.c.l.b16 %v1191
        %v1224 = vunpack.c.l.b16 %v1192
        %v1225 = vunpack.c.l.b16 %v1193
        %v1226 = vunpack.c.l.b16 %v1194
        %v1227 = vunpack.c.l.b16 %v1195
        %v1228 = vunpack.c.l.b16 %v1196
        %v1229 = vunpack.c.l.b16 %v1197
        %v1230 = vunpack.c.l.b16 %v1198
        %v1231 = vunpack.c.l.b16 %v1199
        %v1232 = vpack.c.b16 %v1217, %v1216
        %v1233 = vpack.c.b16 %v1219, %v1218
        %v1234 = vpack.c.b16 %v1221, %v1220
        %v1235 = vpack.c.b16 %v1223, %v1222
        %v1236 = vpack.c.b16 %v1225, %v1224
        %v1237 = vpack.c.b16 %v1227, %v1226
        %v1238 = vpack.c.b16 %v1229, %v1228
        %v1239 = vpack.c.b16 %v1231, %v1230
        %1248 = vmatprep.subr.bf16.mxu0 0
        %1249 = vmatpush1.bf16.msra.mxu0 %v1239
        %1250 = vmatprep.subr.bf16.mxu0 0
        %1251 = vmatpush1.bf16.msra.mxu0 %v1238
        %1252 = vmatprep.subr.bf16.mxu0 0
        %1253 = vmatpush1.bf16.msra.mxu0 %v1237
        %1254 = vmatprep.subr.bf16.mxu0 0
        %1255 = vmatpush1.bf16.msra.mxu0 %v1236
        %1256 = vmatprep.subr.bf16.mxu0 0
        %1257 = vmatpush1.bf16.msra.mxu0 %v1235
        %1258 = vmatprep.subr.bf16.mxu0 0
        %1259 = vmatpush1.bf16.msra.mxu0 %v1234
        %1260 = vmatprep.subr.bf16.mxu0 0
        %1261 = vmatpush1.bf16.msra.mxu0 %v1233
        %1262 = vmatprep.subr.bf16.mxu0 0
        %1263 = vmatpush1.bf16.msra.mxu0 %v1232
        %1264 = vmatprep.subr.bf16.mxu0 0
        %1265 = vmatpush2.bf16.msra.mxu0 0
        %1266 = vmatprep.subr.bf16.mxu0 0
        %1267 = vmatpush2.bf16.msra.mxu0 0
        %1268 = vmatprep.subr.bf16.mxu0 0
        %1269 = vmatpush2.bf16.msra.mxu0 0
        %1270 = vmatprep.subr.bf16.mxu0 0
        %1271 = vmatpush2.bf16.msra.mxu0 0
        %1272 = vmatprep.subr.bf16.mxu0 0
        %1273 = vmatpush2.bf16.msra.mxu0 0
        %1274 = vmatprep.subr.bf16.mxu0 0
        %1275 = vmatpush2.bf16.msra.mxu0 0
        %1276 = vmatprep.subr.bf16.mxu0 0
        %1277 = vmatpush2.bf16.msra.mxu0 0
        %1278 = vmatprep.subr.bf16.mxu0 0
        %1279 = vmatpush2.bf16.msra.mxu0 0
        %1280 = vmatprep.mubr.bf16.mxu0 0
        %1281 = vmatmul.mubr.bf16.gmra.mxu0 %v1182
        %v1282 = vpop.f32.mrf.mxu0
        %v1283 = vadd.f32 0.0, %v1282
        %v1284 = vpop.f32.mrf.mxu0
        %v1285 = vpop.f32.mrf.mxu0
        %v1286 = vadd.f32 0.0, %v1285
        %v1287 = vpop.f32.mrf.mxu0
        %1288 = vdwg.mxu0
        %v1289 = vadd.f32 %v1128, %v1283
        %v1290 = vadd.f32 %v1129, %v1286
        %s1291 = scalar_lea.vmem [#allocation7], 32
        %v1292 = vld [vmem:[%s1291] sm:$0xf]
        %v1293 = vld [vmem:[%s1291 + $0x4] sm:$0xf]
        %v1296 = vunpack.c.l.b16 %v1292
        %v1297 = vunpack.c.l.b16 %v1293
        %v1298 = vpack.c.b16 %v1297, %v1296
        %v1300 = vsel %vm659, %v1298, 0
        %1302 = vmatprep.subr.bf16.mxu0 0
        %1303 = vmatpush1.bf16.msra.mxu0 0
        %1304 = vmatprep.subr.bf16.mxu0 0
        %1305 = vmatpush1.bf16.msra.mxu0 0
        %1306 = vmatprep.subr.bf16.mxu0 0
        %1307 = vmatpush1.bf16.msra.mxu0 0
        %1308 = vmatprep.subr.bf16.mxu0 0
        %1309 = vmatpush1.bf16.msra.mxu0 0
        %1310 = vmatprep.subr.bf16.mxu0 0
        %1311 = vmatpush1.bf16.msra.mxu0 %v651
        %1312 = vmatprep.subr.bf16.mxu0 0
        %1313 = vmatpush1.bf16.msra.mxu0 %v650
        %1314 = vmatprep.subr.bf16.mxu0 0
        %1315 = vmatpush1.bf16.msra.mxu0 %v649
        %1316 = vmatprep.subr.bf16.mxu0 0
        %1317 = vmatpush1.bf16.msra.mxu0 %v648
        %1318 = vmatprep.subr.bf16.mxu0 0
        %1319 = vmatpush2.bf16.msra.mxu0 0
        %1320 = vmatprep.subr.bf16.mxu0 0
        %1321 = vmatpush2.bf16.msra.mxu0 0
        %1322 = vmatprep.subr.bf16.mxu0 0
        %1323 = vmatpush2.bf16.msra.mxu0 0
        %1324 = vmatprep.subr.bf16.mxu0 0
        %1325 = vmatpush2.bf16.msra.mxu0 0
        %1326 = vmatprep.subr.bf16.mxu0 0
        %1327 = vmatpush2.bf16.msra.mxu0 0
        %1328 = vmatprep.subr.bf16.mxu0 0
        %1329 = vmatpush2.bf16.msra.mxu0 0
        %1330 = vmatprep.subr.bf16.mxu0 0
        %1331 = vmatpush2.bf16.msra.mxu0 0
        %1332 = vmatprep.subr.bf16.mxu0 0
        %1333 = vmatpush2.bf16.msra.mxu0 0
        %1334 = vmatprep.mubr.bf16.mxu0 0
        %1335 = vmatmul.mubr.bf16.gmra.mxu0 %v1300
        %v1336 = vpop.f32.mrf.mxu0
        %v1337 = vadd.f32 0.0, %v1336
        %v1338 = vpop.f32.mrf.mxu0
        %v1339 = vpop.f32.mrf.mxu0
        %v1340 = vadd.f32 0.0, %v1339
        %v1341 = vpop.f32.mrf.mxu0
        %1342 = vdwg.mxu0
        %v1343 = vpack.c.bf16 %v1340, %v1337
        %s1344 = scalar_lea.vmem [#allocation10], 256
        %v1345 = vld [vmem:[%s1344] sm:$0xf]
        %v1346 = vld [vmem:[%s1344 + $0x4] sm:$0xf]
        %v1347 = vld [vmem:[%s1344 + $0x8] sm:$0xf]
        %v1348 = vld [vmem:[%s1344 + $0xc] sm:$0xf]
        %v1349 = vld [vmem:[%s1344 + $0x10] sm:$0xf]
        %v1350 = vld [vmem:[%s1344 + $0x14] sm:$0xf]
        %v1351 = vld [vmem:[%s1344 + $0x18] sm:$0xf]
        %v1352 = vld [vmem:[%s1344 + $0x1c] sm:$0xf]
        %v1353 = vld [vmem:[%s1344 + $0x20] sm:$0xf]
        %v1354 = vld [vmem:[%s1344 + $0x24] sm:$0xf]
        %v1355 = vld [vmem:[%s1344 + $0x28] sm:$0xf]
        %v1356 = vld [vmem:[%s1344 + $0x2c] sm:$0xf]
        %v1357 = vld [vmem:[%s1344 + $0x30] sm:$0xf]
        %v1358 = vld [vmem:[%s1344 + $0x34] sm:$0xf]
        %v1359 = vld [vmem:[%s1344 + $0x38] sm:$0xf]
        %v1360 = vld [vmem:[%s1344 + $0x3c] sm:$0xf]
        %v1377 = vunpack.c.l.b16 %v1345
        %v1378 = vunpack.c.l.b16 %v1346
        %v1379 = vunpack.c.l.b16 %v1347
        %v1380 = vunpack.c.l.b16 %v1348
        %v1381 = vunpack.c.l.b16 %v1349
        %v1382 = vunpack.c.l.b16 %v1350
        %v1383 = vunpack.c.l.b16 %v1351
        %v1384 = vunpack.c.l.b16 %v1352
        %v1385 = vunpack.c.l.b16 %v1353
        %v1386 = vunpack.c.l.b16 %v1354
        %v1387 = vunpack.c.l.b16 %v1355
        %v1388 = vunpack.c.l.b16 %v1356
        %v1389 = vunpack.c.l.b16 %v1357
        %v1390 = vunpack.c.l.b16 %v1358
        %v1391 = vunpack.c.l.b16 %v1359
        %v1392 = vunpack.c.l.b16 %v1360
        %v1393 = vpack.c.b16 %v1378, %v1377
        %v1394 = vpack.c.b16 %v1380, %v1379
        %v1395 = vpack.c.b16 %v1382, %v1381
        %v1396 = vpack.c.b16 %v1384, %v1383
        %v1397 = vpack.c.b16 %v1386, %v1385
        %v1398 = vpack.c.b16 %v1388, %v1387
        %v1399 = vpack.c.b16 %v1390, %v1389
        %v1400 = vpack.c.b16 %v1392, %v1391
        %1409 = vmatprep.subr.bf16.mxu0 0
        %1410 = vmatpush1.bf16.msra.mxu0 %v1400
        %1411 = vmatprep.subr.bf16.mxu0 0
        %1412 = vmatpush1.bf16.msra.mxu0 %v1399
        %1413 = vmatprep.subr.bf16.mxu0 0
        %1414 = vmatpush1.bf16.msra.mxu0 %v1398
        %1415 = vmatprep.subr.bf16.mxu0 0
        %1416 = vmatpush1.bf16.msra.mxu0 %v1397
        %1417 = vmatprep.subr.bf16.mxu0 0
        %1418 = vmatpush1.bf16.msra.mxu0 %v1396
        %1419 = vmatprep.subr.bf16.mxu0 0
        %1420 = vmatpush1.bf16.msra.mxu0 %v1395
        %1421 = vmatprep.subr.bf16.mxu0 0
        %1422 = vmatpush1.bf16.msra.mxu0 %v1394
        %1423 = vmatprep.subr.bf16.mxu0 0
        %1424 = vmatpush1.bf16.msra.mxu0 %v1393
        %1425 = vmatprep.subr.bf16.mxu0 0
        %1426 = vmatpush2.bf16.msra.mxu0 0
        %1427 = vmatprep.subr.bf16.mxu0 0
        %1428 = vmatpush2.bf16.msra.mxu0 0
        %1429 = vmatprep.subr.bf16.mxu0 0
        %1430 = vmatpush2.bf16.msra.mxu0 0
        %1431 = vmatprep.subr.bf16.mxu0 0
        %1432 = vmatpush2.bf16.msra.mxu0 0
        %1433 = vmatprep.subr.bf16.mxu0 0
        %1434 = vmatpush2.bf16.msra.mxu0 0
        %1435 = vmatprep.subr.bf16.mxu0 0
        %1436 = vmatpush2.bf16.msra.mxu0 0
        %1437 = vmatprep.subr.bf16.mxu0 0
        %1438 = vmatpush2.bf16.msra.mxu0 0
        %1439 = vmatprep.subr.bf16.mxu0 0
        %1440 = vmatpush2.bf16.msra.mxu0 0
        %1441 = vmatprep.mubr.bf16.mxu0 0
        %1442 = vmatmul.mubr.bf16.gmra.mxu0 %v1343
        %v1443 = vpop.f32.mrf.mxu0
        %v1444 = vadd.f32 0.0, %v1443
        %v1445 = vpop.f32.mrf.mxu0
        %v1446 = vpop.f32.mrf.mxu0
        %v1447 = vadd.f32 0.0, %v1446
        %v1448 = vpop.f32.mrf.mxu0
        %1449 = vdwg.mxu0
        %v1450 = vadd.f32 %v1289, %v1444
        %v1451 = vadd.f32 %v1290, %v1447
        %s1452 = scalar_lea.vmem [#allocation7], 40
        %v1453 = vld [vmem:[%s1452] sm:$0xf]
        %v1454 = vld [vmem:[%s1452 + $0x4] sm:$0xf]
        %v1457 = vunpack.c.l.b16 %v1453
        %v1458 = vunpack.c.l.b16 %v1454
        %v1459 = vpack.c.b16 %v1458, %v1457
        %v1461 = vsel %vm659, %v1459, 0
        %1463 = vmatprep.subr.bf16.mxu0 0
        %1464 = vmatpush1.bf16.msra.mxu0 0
        %1465 = vmatprep.subr.bf16.mxu0 0
        %1466 = vmatpush1.bf16.msra.mxu0 0
        %1467 = vmatprep.subr.bf16.mxu0 0
        %1468 = vmatpush1.bf16.msra.mxu0 0
        %1469 = vmatprep.subr.bf16.mxu0 0
        %1470 = vmatpush1.bf16.msra.mxu0 0
        %1471 = vmatprep.subr.bf16.mxu0 0
        %1472 = vmatpush1.bf16.msra.mxu0 %v651
        %1473 = vmatprep.subr.bf16.mxu0 0
        %1474 = vmatpush1.bf16.msra.mxu0 %v650
        %1475 = vmatprep.subr.bf16.mxu0 0
        %1476 = vmatpush1.bf16.msra.mxu0 %v649
        %1477 = vmatprep.subr.bf16.mxu0 0
        %1478 = vmatpush1.bf16.msra.mxu0 %v648
        %1479 = vmatprep.subr.bf16.mxu0 0
        %1480 = vmatpush2.bf16.msra.mxu0 0
        %1481 = vmatprep.subr.bf16.mxu0 0
        %1482 = vmatpush2.bf16.msra.mxu0 0
        %1483 = vmatprep.subr.bf16.mxu0 0
        %1484 = vmatpush2.bf16.msra.mxu0 0
        %1485 = vmatprep.subr.bf16.mxu0 0
        %1486 = vmatpush2.bf16.msra.mxu0 0
        %1487 = vmatprep.subr.bf16.mxu0 0
        %1488 = vmatpush2.bf16.msra.mxu0 0
        %1489 = vmatprep.subr.bf16.mxu0 0
        %1490 = vmatpush2.bf16.msra.mxu0 0
        %1491 = vmatprep.subr.bf16.mxu0 0
        %1492 = vmatpush2.bf16.msra.mxu0 0
        %1493 = vmatprep.subr.bf16.mxu0 0
        %1494 = vmatpush2.bf16.msra.mxu0 0
        %1495 = vmatprep.mubr.bf16.mxu0 0
        %1496 = vmatmul.mubr.bf16.gmra.mxu0 %v1461
        %v1497 = vpop.f32.mrf.mxu0
        %v1498 = vadd.f32 0.0, %v1497
        %v1499 = vpop.f32.mrf.mxu0
        %v1500 = vpop.f32.mrf.mxu0
        %v1501 = vadd.f32 0.0, %v1500
        %v1502 = vpop.f32.mrf.mxu0
        %1503 = vdwg.mxu0
        %v1504 = vpack.c.bf16 %v1501, %v1498
        %s1505 = scalar_lea.vmem [#allocation10], 320
        %v1506 = vld [vmem:[%s1505] sm:$0xf]
        %v1507 = vld [vmem:[%s1505 + $0x4] sm:$0xf]
        %v1508 = vld [vmem:[%s1505 + $0x8] sm:$0xf]
        %v1509 = vld [vmem:[%s1505 + $0xc] sm:$0xf]
        %v1510 = vld [vmem:[%s1505 + $0x10] sm:$0xf]
        %v1511 = vld [vmem:[%s1505 + $0x14] sm:$0xf]
        %v1512 = vld [vmem:[%s1505 + $0x18] sm:$0xf]
        %v1513 = vld [vmem:[%s1505 + $0x1c] sm:$0xf]
        %v1514 = vld [vmem:[%s1505 + $0x20] sm:$0xf]
        %v1515 = vld [vmem:[%s1505 + $0x24] sm:$0xf]
        %v1516 = vld [vmem:[%s1505 + $0x28] sm:$0xf]
        %v1517 = vld [vmem:[%s1505 + $0x2c] sm:$0xf]
        %v1518 = vld [vmem:[%s1505 + $0x30] sm:$0xf]
        %v1519 = vld [vmem:[%s1505 + $0x34] sm:$0xf]
        %v1520 = vld [vmem:[%s1505 + $0x38] sm:$0xf]
        %v1521 = vld [vmem:[%s1505 + $0x3c] sm:$0xf]
        %v1538 = vunpack.c.l.b16 %v1506
        %v1539 = vunpack.c.l.b16 %v1507
        %v1540 = vunpack.c.l.b16 %v1508
        %v1541 = vunpack.c.l.b16 %v1509
        %v1542 = vunpack.c.l.b16 %v1510
        %v1543 = vunpack.c.l.b16 %v1511
        %v1544 = vunpack.c.l.b16 %v1512
        %v1545 = vunpack.c.l.b16 %v1513
        %v1546 = vunpack.c.l.b16 %v1514
        %v1547 = vunpack.c.l.b16 %v1515
        %v1548 = vunpack.c.l.b16 %v1516
        %v1549 = vunpack.c.l.b16 %v1517
        %v1550 = vunpack.c.l.b16 %v1518
        %v1551 = vunpack.c.l.b16 %v1519
        %v1552 = vunpack.c.l.b16 %v1520
        %v1553 = vunpack.c.l.b16 %v1521
        %v1554 = vpack.c.b16 %v1539, %v1538
        %v1555 = vpack.c.b16 %v1541, %v1540
        %v1556 = vpack.c.b16 %v1543, %v1542
        %v1557 = vpack.c.b16 %v1545, %v1544
        %v1558 = vpack.c.b16 %v1547, %v1546
        %v1559 = vpack.c.b16 %v1549, %v1548
        %v1560 = vpack.c.b16 %v1551, %v1550
        %v1561 = vpack.c.b16 %v1553, %v1552
        %1570 = vmatprep.subr.bf16.mxu0 0
        %1571 = vmatpush1.bf16.msra.mxu0 %v1561
        %1572 = vmatprep.subr.bf16.mxu0 0
        %1573 = vmatpush1.bf16.msra.mxu0 %v1560
        %1574 = vmatprep.subr.bf16.mxu0 0
        %1575 = vmatpush1.bf16.msra.mxu0 %v1559
        %1576 = vmatprep.subr.bf16.mxu0 0
        %1577 = vmatpush1.bf16.msra.mxu0 %v1558
        %1578 = vmatprep.subr.bf16.mxu0 0
        %1579 = vmatpush1.bf16.msra.mxu0 %v1557
        %1580 = vmatprep.subr.bf16.mxu0 0
        %1581 = vmatpush1.bf16.msra.mxu0 %v1556
        %1582 = vmatprep.subr.bf16.mxu0 0
        %1583 = vmatpush1.bf16.msra.mxu0 %v1555
        %1584 = vmatprep.subr.bf16.mxu0 0
        %1585 = vmatpush1.bf16.msra.mxu0 %v1554
        %1586 = vmatprep.subr.bf16.mxu0 0
        %1587 = vmatpush2.bf16.msra.mxu0 0
        %1588 = vmatprep.subr.bf16.mxu0 0
        %1589 = vmatpush2.bf16.msra.mxu0 0
        %1590 = vmatprep.subr.bf16.mxu0 0
        %1591 = vmatpush2.bf16.msra.mxu0 0
        %1592 = vmatprep.subr.bf16.mxu0 0
        %1593 = vmatpush2.bf16.msra.mxu0 0
        %1594 = vmatprep.subr.bf16.mxu0 0
        %1595 = vmatpush2.bf16.msra.mxu0 0
        %1596 = vmatprep.subr.bf16.mxu0 0
        %1597 = vmatpush2.bf16.msra.mxu0 0
        %1598 = vmatprep.subr.bf16.mxu0 0
        %1599 = vmatpush2.bf16.msra.mxu0 0
        %1600 = vmatprep.subr.bf16.mxu0 0
        %1601 = vmatpush2.bf16.msra.mxu0 0
        %1602 = vmatprep.mubr.bf16.mxu0 0
        %1603 = vmatmul.mubr.bf16.gmra.mxu0 %v1504
        %v1604 = vpop.f32.mrf.mxu0
        %v1605 = vadd.f32 0.0, %v1604
        %v1606 = vpop.f32.mrf.mxu0
        %v1607 = vpop.f32.mrf.mxu0
        %v1608 = vadd.f32 0.0, %v1607
        %v1609 = vpop.f32.mrf.mxu0
        %1610 = vdwg.mxu0
        %v1611 = vadd.f32 %v1450, %v1605
        %v1612 = vadd.f32 %v1451, %v1608
        %s1613 = scalar_lea.vmem [#allocation7], 48
        %v1614 = vld [vmem:[%s1613] sm:$0xf]
        %v1615 = vld [vmem:[%s1613 + $0x4] sm:$0xf]
        %v1618 = vunpack.c.l.b16 %v1614
        %v1619 = vunpack.c.l.b16 %v1615
        %v1620 = vpack.c.b16 %v1619, %v1618
        %v1622 = vsel %vm659, %v1620, 0
        %1624 = vmatprep.subr.bf16.mxu0 0
        %1625 = vmatpush1.bf16.msra.mxu0 0
        %1626 = vmatprep.subr.bf16.mxu0 0
        %1627 = vmatpush1.bf16.msra.mxu0 0
        %1628 = vmatprep.subr.bf16.mxu0 0
        %1629 = vmatpush1.bf16.msra.mxu0 0
        %1630 = vmatprep.subr.bf16.mxu0 0
        %1631 = vmatpush1.bf16.msra.mxu0 0
        %1632 = vmatprep.subr.bf16.mxu0 0
        %1633 = vmatpush1.bf16.msra.mxu0 %v651
        %1634 = vmatprep.subr.bf16.mxu0 0
        %1635 = vmatpush1.bf16.msra.mxu0 %v650
        %1636 = vmatprep.subr.bf16.mxu0 0
        %1637 = vmatpush1.bf16.msra.mxu0 %v649
        %1638 = vmatprep.subr.bf16.mxu0 0
        %1639 = vmatpush1.bf16.msra.mxu0 %v648
        %1640 = vmatprep.subr.bf16.mxu0 0
        %1641 = vmatpush2.bf16.msra.mxu0 0
        %1642 = vmatprep.subr.bf16.mxu0 0
        %1643 = vmatpush2.bf16.msra.mxu0 0
        %1644 = vmatprep.subr.bf16.mxu0 0
        %1645 = vmatpush2.bf16.msra.mxu0 0
        %1646 = vmatprep.subr.bf16.mxu0 0
        %1647 = vmatpush2.bf16.msra.mxu0 0
        %1648 = vmatprep.subr.bf16.mxu0 0
        %1649 = vmatpush2.bf16.msra.mxu0 0
        %1650 = vmatprep.subr.bf16.mxu0 0
        %1651 = vmatpush2.bf16.msra.mxu0 0
        %1652 = vmatprep.subr.bf16.mxu0 0
        %1653 = vmatpush2.bf16.msra.mxu0 0
        %1654 = vmatprep.subr.bf16.mxu0 0
        %1655 = vmatpush2.bf16.msra.mxu0 0
        %1656 = vmatprep.mubr.bf16.mxu0 0
        %1657 = vmatmul.mubr.bf16.gmra.mxu0 %v1622
        %v1658 = vpop.f32.mrf.mxu0
        %v1659 = vadd.f32 0.0, %v1658
        %v1660 = vpop.f32.mrf.mxu0
        %v1661 = vpop.f32.mrf.mxu0
        %v1662 = vadd.f32 0.0, %v1661
        %v1663 = vpop.f32.mrf.mxu0
        %1664 = vdwg.mxu0
        %v1665 = vpack.c.bf16 %v1662, %v1659
        %s1666 = scalar_lea.vmem [#allocation10], 384
        %v1667 = vld [vmem:[%s1666] sm:$0xf]
        %v1668 = vld [vmem:[%s1666 + $0x4] sm:$0xf]
        %v1669 = vld [vmem:[%s1666 + $0x8] sm:$0xf]
        %v1670 = vld [vmem:[%s1666 + $0xc] sm:$0xf]
        %v1671 = vld [vmem:[%s1666 + $0x10] sm:$0xf]
        %v1672 = vld [vmem:[%s1666 + $0x14] sm:$0xf]
        %v1673 = vld [vmem:[%s1666 + $0x18] sm:$0xf]
        %v1674 = vld [vmem:[%s1666 + $0x1c] sm:$0xf]
        %v1675 = vld [vmem:[%s1666 + $0x20] sm:$0xf]
        %v1676 = vld [vmem:[%s1666 + $0x24] sm:$0xf]
        %v1677 = vld [vmem:[%s1666 + $0x28] sm:$0xf]
        %v1678 = vld [vmem:[%s1666 + $0x2c] sm:$0xf]
        %v1679 = vld [vmem:[%s1666 + $0x30] sm:$0xf]
        %v1680 = vld [vmem:[%s1666 + $0x34] sm:$0xf]
        %v1681 = vld [vmem:[%s1666 + $0x38] sm:$0xf]
        %v1682 = vld [vmem:[%s1666 + $0x3c] sm:$0xf]
        %v1699 = vunpack.c.l.b16 %v1667
        %v1700 = vunpack.c.l.b16 %v1668
        %v1701 = vunpack.c.l.b16 %v1669
        %v1702 = vunpack.c.l.b16 %v1670
        %v1703 = vunpack.c.l.b16 %v1671
        %v1704 = vunpack.c.l.b16 %v1672
        %v1705 = vunpack.c.l.b16 %v1673
        %v1706 = vunpack.c.l.b16 %v1674
        %v1707 = vunpack.c.l.b16 %v1675
        %v1708 = vunpack.c.l.b16 %v1676
        %v1709 = vunpack.c.l.b16 %v1677
        %v1710 = vunpack.c.l.b16 %v1678
        %v1711 = vunpack.c.l.b16 %v1679
        %v1712 = vunpack.c.l.b16 %v1680
        %v1713 = vunpack.c.l.b16 %v1681
        %v1714 = vunpack.c.l.b16 %v1682
        %v1715 = vpack.c.b16 %v1700, %v1699
        %v1716 = vpack.c.b16 %v1702, %v1701
        %v1717 = vpack.c.b16 %v1704, %v1703
        %v1718 = vpack.c.b16 %v1706, %v1705
        %v1719 = vpack.c.b16 %v1708, %v1707
        %v1720 = vpack.c.b16 %v1710, %v1709
        %v1721 = vpack.c.b16 %v1712, %v1711
        %v1722 = vpack.c.b16 %v1714, %v1713
        %1731 = vmatprep.subr.bf16.mxu0 0
        %1732 = vmatpush1.bf16.msra.mxu0 %v1722
        %1733 = vmatprep.subr.bf16.mxu0 0
        %1734 = vmatpush1.bf16.msra.mxu0 %v1721
        %1735 = vmatprep.subr.bf16.mxu0 0
        %1736 = vmatpush1.bf16.msra.mxu0 %v1720
        %1737 = vmatprep.subr.bf16.mxu0 0
        %1738 = vmatpush1.bf16.msra.mxu0 %v1719
        %1739 = vmatprep.subr.bf16.mxu0 0
        %1740 = vmatpush1.bf16.msra.mxu0 %v1718
        %1741 = vmatprep.subr.bf16.mxu0 0
        %1742 = vmatpush1.bf16.msra.mxu0 %v1717
        %1743 = vmatprep.subr.bf16.mxu0 0
        %1744 = vmatpush1.bf16.msra.mxu0 %v1716
        %1745 = vmatprep.subr.bf16.mxu0 0
        %1746 = vmatpush1.bf16.msra.mxu0 %v1715
        %1747 = vmatprep.subr.bf16.mxu0 0
        %1748 = vmatpush2.bf16.msra.mxu0 0
        %1749 = vmatprep.subr.bf16.mxu0 0
        %1750 = vmatpush2.bf16.msra.mxu0 0
        %1751 = vmatprep.subr.bf16.mxu0 0
        %1752 = vmatpush2.bf16.msra.mxu0 0
        %1753 = vmatprep.subr.bf16.mxu0 0
        %1754 = vmatpush2.bf16.msra.mxu0 0
        %1755 = vmatprep.subr.bf16.mxu0 0
        %1756 = vmatpush2.bf16.msra.mxu0 0
        %1757 = vmatprep.subr.bf16.mxu0 0
        %1758 = vmatpush2.bf16.msra.mxu0 0
        %1759 = vmatprep.subr.bf16.mxu0 0
        %1760 = vmatpush2.bf16.msra.mxu0 0
        %1761 = vmatprep.subr.bf16.mxu0 0
        %1762 = vmatpush2.bf16.msra.mxu0 0
        %1763 = vmatprep.mubr.bf16.mxu0 0
        %1764 = vmatmul.mubr.bf16.gmra.mxu0 %v1665
        %v1765 = vpop.f32.mrf.mxu0
        %v1766 = vadd.f32 0.0, %v1765
        %v1767 = vpop.f32.mrf.mxu0
        %v1768 = vpop.f32.mrf.mxu0
        %v1769 = vadd.f32 0.0, %v1768
        %v1770 = vpop.f32.mrf.mxu0
        %1771 = vdwg.mxu0
        %v1772 = vadd.f32 %v1611, %v1766
        %v1773 = vadd.f32 %v1612, %v1769
        %s1774 = scalar_lea.vmem [#allocation7], 56
        %v1775 = vld [vmem:[%s1774] sm:$0xf]
        %v1776 = vld [vmem:[%s1774 + $0x4] sm:$0xf]
        %v1779 = vunpack.c.l.b16 %v1775
        %v1780 = vunpack.c.l.b16 %v1776
        %v1781 = vpack.c.b16 %v1780, %v1779
        %v1783 = vsel %vm659, %v1781, 0
        %1785 = vmatprep.subr.bf16.mxu0 0
        %1786 = vmatpush1.bf16.msra.mxu0 0
        %1787 = vmatprep.subr.bf16.mxu0 0
        %1788 = vmatpush1.bf16.msra.mxu0 0
        %1789 = vmatprep.subr.bf16.mxu0 0
        %1790 = vmatpush1.bf16.msra.mxu0 0
        %1791 = vmatprep.subr.bf16.mxu0 0
        %1792 = vmatpush1.bf16.msra.mxu0 0
        %1793 = vmatprep.subr.bf16.mxu0 0
        %1794 = vmatpush1.bf16.msra.mxu0 %v651
        %1795 = vmatprep.subr.bf16.mxu0 0
        %1796 = vmatpush1.bf16.msra.mxu0 %v650
        %1797 = vmatprep.subr.bf16.mxu0 0
        %1798 = vmatpush1.bf16.msra.mxu0 %v649
        %1799 = vmatprep.subr.bf16.mxu0 0
        %1800 = vmatpush1.bf16.msra.mxu0 %v648
        %1801 = vmatprep.subr.bf16.mxu0 0
        %1802 = vmatpush2.bf16.msra.mxu0 0
        %1803 = vmatprep.subr.bf16.mxu0 0
        %1804 = vmatpush2.bf16.msra.mxu0 0
        %1805 = vmatprep.subr.bf16.mxu0 0
        %1806 = vmatpush2.bf16.msra.mxu0 0
        %1807 = vmatprep.subr.bf16.mxu0 0
        %1808 = vmatpush2.bf16.msra.mxu0 0
        %1809 = vmatprep.subr.bf16.mxu0 0
        %1810 = vmatpush2.bf16.msra.mxu0 0
        %1811 = vmatprep.subr.bf16.mxu0 0
        %1812 = vmatpush2.bf16.msra.mxu0 0
        %1813 = vmatprep.subr.bf16.mxu0 0
        %1814 = vmatpush2.bf16.msra.mxu0 0
        %1815 = vmatprep.subr.bf16.mxu0 0
        %1816 = vmatpush2.bf16.msra.mxu0 0
        %1817 = vmatprep.mubr.bf16.mxu0 0
        %1818 = vmatmul.mubr.bf16.gmra.mxu0 %v1783
        %v1819 = vpop.f32.mrf.mxu0
        %v1820 = vadd.f32 0.0, %v1819
        %v1821 = vpop.f32.mrf.mxu0
        %v1822 = vpop.f32.mrf.mxu0
        %v1823 = vadd.f32 0.0, %v1822
        %v1824 = vpop.f32.mrf.mxu0
        %1825 = vdwg.mxu0
        %v1826 = vpack.c.bf16 %v1823, %v1820
        %s1827 = scalar_lea.vmem [#allocation10], 448
        %v1828 = vld [vmem:[%s1827] sm:$0xf]
        %v1829 = vld [vmem:[%s1827 + $0x4] sm:$0xf]
        %v1830 = vld [vmem:[%s1827 + $0x8] sm:$0xf]
        %v1831 = vld [vmem:[%s1827 + $0xc] sm:$0xf]
        %v1832 = vld [vmem:[%s1827 + $0x10] sm:$0xf]
        %v1833 = vld [vmem:[%s1827 + $0x14] sm:$0xf]
        %v1834 = vld [vmem:[%s1827 + $0x18] sm:$0xf]
        %v1835 = vld [vmem:[%s1827 + $0x1c] sm:$0xf]
        %v1836 = vld [vmem:[%s1827 + $0x20] sm:$0xf]
        %v1837 = vld [vmem:[%s1827 + $0x24] sm:$0xf]
        %v1838 = vld [vmem:[%s1827 + $0x28] sm:$0xf]
        %v1839 = vld [vmem:[%s1827 + $0x2c] sm:$0xf]
        %v1840 = vld [vmem:[%s1827 + $0x30] sm:$0xf]
        %v1841 = vld [vmem:[%s1827 + $0x34] sm:$0xf]
        %v1842 = vld [vmem:[%s1827 + $0x38] sm:$0xf]
        %v1843 = vld [vmem:[%s1827 + $0x3c] sm:$0xf]
        %v1860 = vunpack.c.l.b16 %v1828
        %v1861 = vunpack.c.l.b16 %v1829
        %v1862 = vunpack.c.l.b16 %v1830
        %v1863 = vunpack.c.l.b16 %v1831
        %v1864 = vunpack.c.l.b16 %v1832
        %v1865 = vunpack.c.l.b16 %v1833
        %v1866 = vunpack.c.l.b16 %v1834
        %v1867 = vunpack.c.l.b16 %v1835
        %v1868 = vunpack.c.l.b16 %v1836
        %v1869 = vunpack.c.l.b16 %v1837
        %v1870 = vunpack.c.l.b16 %v1838
        %v1871 = vunpack.c.l.b16 %v1839
        %v1872 = vunpack.c.l.b16 %v1840
        %v1873 = vunpack.c.l.b16 %v1841
        %v1874 = vunpack.c.l.b16 %v1842
        %v1875 = vunpack.c.l.b16 %v1843
        %v1876 = vpack.c.b16 %v1861, %v1860
        %v1877 = vpack.c.b16 %v1863, %v1862
        %v1878 = vpack.c.b16 %v1865, %v1864
        %v1879 = vpack.c.b16 %v1867, %v1866
        %v1880 = vpack.c.b16 %v1869, %v1868
        %v1881 = vpack.c.b16 %v1871, %v1870
        %v1882 = vpack.c.b16 %v1873, %v1872
        %v1883 = vpack.c.b16 %v1875, %v1874
        %1892 = vmatprep.subr.bf16.mxu0 0
        %1893 = vmatpush1.bf16.msra.mxu0 %v1883
        %1894 = vmatprep.subr.bf16.mxu0 0
        %1895 = vmatpush1.bf16.msra.mxu0 %v1882
        %1896 = vmatprep.subr.bf16.mxu0 0
        %1897 = vmatpush1.bf16.msra.mxu0 %v1881
        %1898 = vmatprep.subr.bf16.mxu0 0
        %1899 = vmatpush1.bf16.msra.mxu0 %v1880
        %1900 = vmatprep.subr.bf16.mxu0 0
        %1901 = vmatpush1.bf16.msra.mxu0 %v1879
        %1902 = vmatprep.subr.bf16.mxu0 0
        %1903 = vmatpush1.bf16.msra.mxu0 %v1878
        %1904 = vmatprep.subr.bf16.mxu0 0
        %1905 = vmatpush1.bf16.msra.mxu0 %v1877
        %1906 = vmatprep.subr.bf16.mxu0 0
        %1907 = vmatpush1.bf16.msra.mxu0 %v1876
        %1908 = vmatprep.subr.bf16.mxu0 0
        %1909 = vmatpush2.bf16.msra.mxu0 0
        %1910 = vmatprep.subr.bf16.mxu0 0
        %1911 = vmatpush2.bf16.msra.mxu0 0
        %1912 = vmatprep.subr.bf16.mxu0 0
        %1913 = vmatpush2.bf16.msra.mxu0 0
        %1914 = vmatprep.subr.bf16.mxu0 0
        %1915 = vmatpush2.bf16.msra.mxu0 0
        %1916 = vmatprep.subr.bf16.mxu0 0
        %1917 = vmatpush2.bf16.msra.mxu0 0
        %1918 = vmatprep.subr.bf16.mxu0 0
        %1919 = vmatpush2.bf16.msra.mxu0 0
        %1920 = vmatprep.subr.bf16.mxu0 0
        %1921 = vmatpush2.bf16.msra.mxu0 0
        %1922 = vmatprep.subr.bf16.mxu0 0
        %1923 = vmatpush2.bf16.msra.mxu0 0
        %1924 = vmatprep.mubr.bf16.mxu0 0
        %1925 = vmatmul.mubr.bf16.gmra.mxu0 %v1826
        %v1926 = vpop.f32.mrf.mxu0
        %v1927 = vadd.f32 0.0, %v1926
        %v1928 = vpop.f32.mrf.mxu0
        %v1929 = vpop.f32.mrf.mxu0
        %v1930 = vadd.f32 0.0, %v1929
        %v1931 = vpop.f32.mrf.mxu0
        %1932 = vdwg.mxu0
        %v1933 = vadd.f32 %v1772, %v1927
        %v1934 = vadd.f32 %v1773, %v1930
        %s1935 = scalar_lea.vmem [#allocation7], 64
        %v1936 = vld [vmem:[%s1935] sm:$0xf]
        %v1937 = vld [vmem:[%s1935 + $0x4] sm:$0xf]
        %v1940 = vunpack.c.l.b16 %v1936
        %v1941 = vunpack.c.l.b16 %v1937
        %v1942 = vpack.c.b16 %v1941, %v1940
        %v1944 = vsel %vm659, %v1942, 0
        %1946 = vmatprep.subr.bf16.mxu0 0
        %1947 = vmatpush1.bf16.msra.mxu0 0
        %1948 = vmatprep.subr.bf16.mxu0 0
        %1949 = vmatpush1.bf16.msra.mxu0 0
        %1950 = vmatprep.subr.bf16.mxu0 0
        %1951 = vmatpush1.bf16.msra.mxu0 0
        %1952 = vmatprep.subr.bf16.mxu0 0
        %1953 = vmatpush1.bf16.msra.mxu0 0
        %1954 = vmatprep.subr.bf16.mxu0 0
        %1955 = vmatpush1.bf16.msra.mxu0 %v651
        %1956 = vmatprep.subr.bf16.mxu0 0
        %1957 = vmatpush1.bf16.msra.mxu0 %v650
        %1958 = vmatprep.subr.bf16.mxu0 0
        %1959 = vmatpush1.bf16.msra.mxu0 %v649
        %1960 = vmatprep.subr.bf16.mxu0 0
        %1961 = vmatpush1.bf16.msra.mxu0 %v648
        %1962 = vmatprep.subr.bf16.mxu0 0
        %1963 = vmatpush2.bf16.msra.mxu0 0
        %1964 = vmatprep.subr.bf16.mxu0 0
        %1965 = vmatpush2.bf16.msra.mxu0 0
        %1966 = vmatprep.subr.bf16.mxu0 0
        %1967 = vmatpush2.bf16.msra.mxu0 0
        %1968 = vmatprep.subr.bf16.mxu0 0
        %1969 = vmatpush2.bf16.msra.mxu0 0
        %1970 = vmatprep.subr.bf16.mxu0 0
        %1971 = vmatpush2.bf16.msra.mxu0 0
        %1972 = vmatprep.subr.bf16.mxu0 0
        %1973 = vmatpush2.bf16.msra.mxu0 0
        %1974 = vmatprep.subr.bf16.mxu0 0
        %1975 = vmatpush2.bf16.msra.mxu0 0
        %1976 = vmatprep.subr.bf16.mxu0 0
        %1977 = vmatpush2.bf16.msra.mxu0 0
        %1978 = vmatprep.mubr.bf16.mxu0 0
        %1979 = vmatmul.mubr.bf16.gmra.mxu0 %v1944
        %v1980 = vpop.f32.mrf.mxu0
        %v1981 = vadd.f32 0.0, %v1980
        %v1982 = vpop.f32.mrf.mxu0
        %v1983 = vpop.f32.mrf.mxu0
        %v1984 = vadd.f32 0.0, %v1983
        %v1985 = vpop.f32.mrf.mxu0
        %1986 = vdwg.mxu0
        %v1987 = vpack.c.bf16 %v1984, %v1981
        %s1988 = scalar_lea.vmem [#allocation10], 512
        %v1989 = vld [vmem:[%s1988] sm:$0xf]
        %v1990 = vld [vmem:[%s1988 + $0x4] sm:$0xf]
        %v1991 = vld [vmem:[%s1988 + $0x8] sm:$0xf]
        %v1992 = vld [vmem:[%s1988 + $0xc] sm:$0xf]
        %v1993 = vld [vmem:[%s1988 + $0x10] sm:$0xf]
        %v1994 = vld [vmem:[%s1988 + $0x14] sm:$0xf]
        %v1995 = vld [vmem:[%s1988 + $0x18] sm:$0xf]
        %v1996 = vld [vmem:[%s1988 + $0x1c] sm:$0xf]
        %v1997 = vld [vmem:[%s1988 + $0x20] sm:$0xf]
        %v1998 = vld [vmem:[%s1988 + $0x24] sm:$0xf]
        %v1999 = vld [vmem:[%s1988 + $0x28] sm:$0xf]
        %v2000 = vld [vmem:[%s1988 + $0x2c] sm:$0xf]
        %v2001 = vld [vmem:[%s1988 + $0x30] sm:$0xf]
        %v2002 = vld [vmem:[%s1988 + $0x34] sm:$0xf]
        %v2003 = vld [vmem:[%s1988 + $0x38] sm:$0xf]
        %v2004 = vld [vmem:[%s1988 + $0x3c] sm:$0xf]
        %v2021 = vunpack.c.l.b16 %v1989
        %v2022 = vunpack.c.l.b16 %v1990
        %v2023 = vunpack.c.l.b16 %v1991
        %v2024 = vunpack.c.l.b16 %v1992
        %v2025 = vunpack.c.l.b16 %v1993
        %v2026 = vunpack.c.l.b16 %v1994
        %v2027 = vunpack.c.l.b16 %v1995
        %v2028 = vunpack.c.l.b16 %v1996
        %v2029 = vunpack.c.l.b16 %v1997
        %v2030 = vunpack.c.l.b16 %v1998
        %v2031 = vunpack.c.l.b16 %v1999
        %v2032 = vunpack.c.l.b16 %v2000
        %v2033 = vunpack.c.l.b16 %v2001
        %v2034 = vunpack.c.l.b16 %v2002
        %v2035 = vunpack.c.l.b16 %v2003
        %v2036 = vunpack.c.l.b16 %v2004
        %v2037 = vpack.c.b16 %v2022, %v2021
        %v2038 = vpack.c.b16 %v2024, %v2023
        %v2039 = vpack.c.b16 %v2026, %v2025
        %v2040 = vpack.c.b16 %v2028, %v2027
        %v2041 = vpack.c.b16 %v2030, %v2029
        %v2042 = vpack.c.b16 %v2032, %v2031
        %v2043 = vpack.c.b16 %v2034, %v2033
        %v2044 = vpack.c.b16 %v2036, %v2035
        %2053 = vmatprep.subr.bf16.mxu0 0
        %2054 = vmatpush1.bf16.msra.mxu0 %v2044
        %2055 = vmatprep.subr.bf16.mxu0 0
        %2056 = vmatpush1.bf16.msra.mxu0 %v2043
        %2057 = vmatprep.subr.bf16.mxu0 0
        %2058 = vmatpush1.bf16.msra.mxu0 %v2042
        %2059 = vmatprep.subr.bf16.mxu0 0
        %2060 = vmatpush1.bf16.msra.mxu0 %v2041
        %2061 = vmatprep.subr.bf16.mxu0 0
        %2062 = vmatpush1.bf16.msra.mxu0 %v2040
        %2063 = vmatprep.subr.bf16.mxu0 0
        %2064 = vmatpush1.bf16.msra.mxu0 %v2039
        %2065 = vmatprep.subr.bf16.mxu0 0
        %2066 = vmatpush1.bf16.msra.mxu0 %v2038
        %2067 = vmatprep.subr.bf16.mxu0 0
        %2068 = vmatpush1.bf16.msra.mxu0 %v2037
        %2069 = vmatprep.subr.bf16.mxu0 0
        %2070 = vmatpush2.bf16.msra.mxu0 0
        %2071 = vmatprep.subr.bf16.mxu0 0
        %2072 = vmatpush2.bf16.msra.mxu0 0
        %2073 = vmatprep.subr.bf16.mxu0 0
        %2074 = vmatpush2.bf16.msra.mxu0 0
        %2075 = vmatprep.subr.bf16.mxu0 0
        %2076 = vmatpush2.bf16.msra.mxu0 0
        %2077 = vmatprep.subr.bf16.mxu0 0
        %2078 = vmatpush2.bf16.msra.mxu0 0
        %2079 = vmatprep.subr.bf16.mxu0 0
        %2080 = vmatpush2.bf16.msra.mxu0 0
        %2081 = vmatprep.subr.bf16.mxu0 0
        %2082 = vmatpush2.bf16.msra.mxu0 0
        %2083 = vmatprep.subr.bf16.mxu0 0
        %2084 = vmatpush2.bf16.msra.mxu0 0
        %2085 = vmatprep.mubr.bf16.mxu0 0
        %2086 = vmatmul.mubr.bf16.gmra.mxu0 %v1987
        %v2087 = vpop.f32.mrf.mxu0
        %v2088 = vadd.f32 0.0, %v2087
        %v2089 = vpop.f32.mrf.mxu0
        %v2090 = vpop.f32.mrf.mxu0
        %v2091 = vadd.f32 0.0, %v2090
        %v2092 = vpop.f32.mrf.mxu0
        %2093 = vdwg.mxu0
        %v2094 = vadd.f32 %v1933, %v2088
        %v2095 = vadd.f32 %v1934, %v2091
        %v2096 = vld [vmem:[%s7] sm:$0x1]
        %v2098 = vlaneseq
        %v2099 = vshrl.u32 %v2098, 7
        %v2100 = vsub.s32 0, %v2099
        %v2101 = vrot.slane %v2096, %v2100
        %v2103 = vadd.f32 %v2094, %v2101
        %v2104 = vadd.f32 %v2095, %v2101
        %v2105 = vmax.f32 %v2103, 0.0
        %v2106 = vmax.f32 %v2104, 0.0
        %v2107 = vpack.c.bf16 %v2106, %v2105
        %v2108 = vld [vmem:[#allocation12] sm:$0xf]
        %v2109 = vld [vmem:[#allocation12 + $0x4] sm:$0xf]
        %v2110 = vld [vmem:[#allocation12 + $0x8] sm:$0xf]
        %v2111 = vld [vmem:[#allocation12 + $0xc] sm:$0xf]
        %v2112 = vld [vmem:[#allocation12 + $0x10] sm:$0xf]
        %v2113 = vld [vmem:[#allocation12 + $0x14] sm:$0xf]
        %v2114 = vld [vmem:[#allocation12 + $0x18] sm:$0xf]
        %v2115 = vld [vmem:[#allocation12 + $0x1c] sm:$0xf]
        %v2116 = vld [vmem:[#allocation12 + $0x20] sm:$0xf]
        %v2117 = vld [vmem:[#allocation12 + $0x24] sm:$0xf]
        %v2118 = vld [vmem:[#allocation12 + $0x28] sm:$0xf]
        %v2119 = vld [vmem:[#allocation12 + $0x2c] sm:$0xf]
        %v2120 = vld [vmem:[#allocation12 + $0x30] sm:$0xf]
        %v2121 = vld [vmem:[#allocation12 + $0x34] sm:$0xf]
        %v2122 = vld [vmem:[#allocation12 + $0x38] sm:$0xf]
        %v2123 = vld [vmem:[#allocation12 + $0x3c] sm:$0xf]
        %v2124 = vld [vmem:[%s8] sm:$0x1]
        %v2126 = vlaneseq
        %v2127 = vshrl.u32 %v2126, 7
        %v2128 = vsub.s32 0, %v2127
        %v2129 = vrot.slane %v2124, %v2128
        %v2147 = vunpack.c.l.b16 %v2108
        %v2148 = vunpack.c.l.b16 %v2109
        %v2149 = vunpack.c.l.b16 %v2110
        %v2150 = vunpack.c.l.b16 %v2111
        %v2151 = vunpack.c.l.b16 %v2112
        %v2152 = vunpack.c.l.b16 %v2113
        %v2153 = vunpack.c.l.b16 %v2114
        %v2154 = vunpack.c.l.b16 %v2115
        %v2155 = vunpack.c.l.b16 %v2116
        %v2156 = vunpack.c.l.b16 %v2117
        %v2157 = vunpack.c.l.b16 %v2118
        %v2158 = vunpack.c.l.b16 %v2119
        %v2159 = vunpack.c.l.b16 %v2120
        %v2160 = vunpack.c.l.b16 %v2121
        %v2161 = vunpack.c.l.b16 %v2122
        %v2162 = vunpack.c.l.b16 %v2123
        %v2163 = vpack.c.b16 %v2148, %v2147
        %v2164 = vpack.c.b16 %v2150, %v2149
        %v2165 = vpack.c.b16 %v2152, %v2151
        %v2166 = vpack.c.b16 %v2154, %v2153
        %v2167 = vpack.c.b16 %v2156, %v2155
        %v2168 = vpack.c.b16 %v2158, %v2157
        %v2169 = vpack.c.b16 %v2160, %v2159
        %v2170 = vpack.c.b16 %v2162, %v2161
        %2179 = vmatprep.subr.bf16.mxu0 0
        %2180 = vmatpush1.bf16.msra.mxu0 %v2170
        %2181 = vmatprep.subr.bf16.mxu0 0
        %2182 = vmatpush1.bf16.msra.mxu0 %v2169
        %2183 = vmatprep.subr.bf16.mxu0 0
        %2184 = vmatpush1.bf16.msra.mxu0 %v2168
        %2185 = vmatprep.subr.bf16.mxu0 0
        %2186 = vmatpush1.bf16.msra.mxu0 %v2167
        %2187 = vmatprep.subr.bf16.mxu0 0
        %2188 = vmatpush1.bf16.msra.mxu0 %v2166
        %2189 = vmatprep.subr.bf16.mxu0 0
        %2190 = vmatpush1.bf16.msra.mxu0 %v2165
        %2191 = vmatprep.subr.bf16.mxu0 0
        %2192 = vmatpush1.bf16.msra.mxu0 %v2164
        %2193 = vmatprep.subr.bf16.mxu0 0
        %2194 = vmatpush1.bf16.msra.mxu0 %v2163
        %2195 = vmatprep.subr.bf16.mxu0 0
        %2196 = vmatpush2.bf16.msra.mxu0 0
        %2197 = vmatprep.subr.bf16.mxu0 0
        %2198 = vmatpush2.bf16.msra.mxu0 0
        %2199 = vmatprep.subr.bf16.mxu0 0
        %2200 = vmatpush2.bf16.msra.mxu0 0
        %2201 = vmatprep.subr.bf16.mxu0 0
        %2202 = vmatpush2.bf16.msra.mxu0 0
        %2203 = vmatprep.subr.bf16.mxu0 0
        %2204 = vmatpush2.bf16.msra.mxu0 0
        %2205 = vmatprep.subr.bf16.mxu0 0
        %2206 = vmatpush2.bf16.msra.mxu0 0
        %2207 = vmatprep.subr.bf16.mxu0 0
        %2208 = vmatpush2.bf16.msra.mxu0 0
        %2209 = vmatprep.subr.bf16.mxu0 0
        %2210 = vmatpush2.bf16.msra.mxu0 0
        %2211 = vmatprep.mubr.bf16.mxu0 0
        %2212 = vmatmul.mubr.bf16.gmra.mxu0 %v2107
        %v2213 = vpop.f32.mrf.mxu0
        %v2214 = vadd.f32 %v2129, %v2213
        %v2215 = vpop.f32.mrf.mxu0
        %v2216 = vpop.f32.mrf.mxu0
        %v2217 = vadd.f32 %v2129, %v2216
        %v2218 = vpop.f32.mrf.mxu0
        %2219 = vdwg.mxu0
        %2220 = vmatprep.subr.bf16.mxu0 0
        %2221 = vmatpush1.bf16.msra.mxu0 0
        %2222 = vmatprep.subr.bf16.mxu0 0
        %2223 = vmatpush1.bf16.msra.mxu0 0
        %2224 = vmatprep.subr.bf16.mxu0 0
        %2225 = vmatpush1.bf16.msra.mxu0 0
        %2226 = vmatprep.subr.bf16.mxu0 0
        %2227 = vmatpush1.bf16.msra.mxu0 0
        %2228 = vmatprep.subr.bf16.mxu0 0
        %2229 = vmatpush1.bf16.msra.mxu0 %v503
        %2230 = vmatprep.subr.bf16.mxu0 0
        %2231 = vmatpush1.bf16.msra.mxu0 %v502
        %2232 = vmatprep.subr.bf16.mxu0 0
        %2233 = vmatpush1.bf16.msra.mxu0 %v501
        %2234 = vmatprep.subr.bf16.mxu0 0
        %2235 = vmatpush1.bf16.msra.mxu0 %v500
        %2236 = vmatprep.subr.bf16.mxu0 0
        %2237 = vmatpush2.bf16.msra.mxu0 0
        %2238 = vmatprep.subr.bf16.mxu0 0
        %2239 = vmatpush2.bf16.msra.mxu0 0
        %2240 = vmatprep.subr.bf16.mxu0 0
        %2241 = vmatpush2.bf16.msra.mxu0 0
        %2242 = vmatprep.subr.bf16.mxu0 0
        %2243 = vmatpush2.bf16.msra.mxu0 0
        %2244 = vmatprep.subr.bf16.mxu0 0
        %2245 = vmatpush2.bf16.msra.mxu0 0
        %2246 = vmatprep.subr.bf16.mxu0 0
        %2247 = vmatpush2.bf16.msra.mxu0 0
        %2248 = vmatprep.subr.bf16.mxu0 0
        %2249 = vmatpush2.bf16.msra.mxu0 0
        %2250 = vmatprep.subr.bf16.mxu0 0
        %2251 = vmatpush2.bf16.msra.mxu0 0
        %2252 = vmatprep.mubr.bf16.mxu0 0
        %2253 = vmatmul.mubr.bf16.gmra.mxu0 %v1300
        %v2254 = vpop.f32.mrf.mxu0
        %v2255 = vadd.f32 0.0, %v2254
        %v2256 = vpop.f32.mrf.mxu0
        %v2257 = vpop.f32.mrf.mxu0
        %v2258 = vadd.f32 0.0, %v2257
        %v2259 = vpop.f32.mrf.mxu0
        %2260 = vdwg.mxu0
        %v2261 = vpack.c.bf16 %v2258, %v2255
        %v2262 = vld [vmem:[#allocation13] sm:$0xf]
        %v2263 = vld [vmem:[#allocation13 + $0x4] sm:$0xf]
        %v2264 = vld [vmem:[#allocation13 + $0x8] sm:$0xf]
        %v2265 = vld [vmem:[#allocation13 + $0xc] sm:$0xf]
        %v2266 = vld [vmem:[#allocation13 + $0x10] sm:$0xf]
        %v2267 = vld [vmem:[#allocation13 + $0x14] sm:$0xf]
        %v2268 = vld [vmem:[#allocation13 + $0x18] sm:$0xf]
        %v2269 = vld [vmem:[#allocation13 + $0x1c] sm:$0xf]
        %v2270 = vld [vmem:[#allocation13 + $0x20] sm:$0xf]
        %v2271 = vld [vmem:[#allocation13 + $0x24] sm:$0xf]
        %v2272 = vld [vmem:[#allocation13 + $0x28] sm:$0xf]
        %v2273 = vld [vmem:[#allocation13 + $0x2c] sm:$0xf]
        %v2274 = vld [vmem:[#allocation13 + $0x30] sm:$0xf]
        %v2275 = vld [vmem:[#allocation13 + $0x34] sm:$0xf]
        %v2276 = vld [vmem:[#allocation13 + $0x38] sm:$0xf]
        %v2277 = vld [vmem:[#allocation13 + $0x3c] sm:$0xf]
        %v2278 = vld [vmem:[%s10] sm:$0x1]
        %v2280 = vlaneseq
        %v2281 = vshrl.u32 %v2280, 7
        %v2282 = vsub.s32 0, %v2281
        %v2283 = vrot.slane %v2278, %v2282
        %v2301 = vunpack.c.l.b16 %v2262
        %v2302 = vunpack.c.l.b16 %v2263
        %v2303 = vunpack.c.l.b16 %v2264
        %v2304 = vunpack.c.l.b16 %v2265
        %v2305 = vunpack.c.l.b16 %v2266
        %v2306 = vunpack.c.l.b16 %v2267
        %v2307 = vunpack.c.l.b16 %v2268
        %v2308 = vunpack.c.l.b16 %v2269
        %v2309 = vunpack.c.l.b16 %v2270
        %v2310 = vunpack.c.l.b16 %v2271
        %v2311 = vunpack.c.l.b16 %v2272
        %v2312 = vunpack.c.l.b16 %v2273
        %v2313 = vunpack.c.l.b16 %v2274
        %v2314 = vunpack.c.l.b16 %v2275
        %v2315 = vunpack.c.l.b16 %v2276
        %v2316 = vunpack.c.l.b16 %v2277
        %v2317 = vpack.c.b16 %v2302, %v2301
        %v2318 = vpack.c.b16 %v2304, %v2303
        %v2319 = vpack.c.b16 %v2306, %v2305
        %v2320 = vpack.c.b16 %v2308, %v2307
        %v2321 = vpack.c.b16 %v2310, %v2309
        %v2322 = vpack.c.b16 %v2312, %v2311
        %v2323 = vpack.c.b16 %v2314, %v2313
        %v2324 = vpack.c.b16 %v2316, %v2315
        %2333 = vmatprep.subr.bf16.mxu0 0
        %2334 = vmatpush1.bf16.msra.mxu0 %v2324
        %2335 = vmatprep.subr.bf16.mxu0 0
        %2336 = vmatpush1.bf16.msra.mxu0 %v2323
        %2337 = vmatprep.subr.bf16.mxu0 0
        %2338 = vmatpush1.bf16.msra.mxu0 %v2322
        %2339 = vmatprep.subr.bf16.mxu0 0
        %2340 = vmatpush1.bf16.msra.mxu0 %v2321
        %2341 = vmatprep.subr.bf16.mxu0 0
        %2342 = vmatpush1.bf16.msra.mxu0 %v2320
        %2343 = vmatprep.subr.bf16.mxu0 0
        %2344 = vmatpush1.bf16.msra.mxu0 %v2319
        %2345 = vmatprep.subr.bf16.mxu0 0
        %2346 = vmatpush1.bf16.msra.mxu0 %v2318
        %2347 = vmatprep.subr.bf16.mxu0 0
        %2348 = vmatpush1.bf16.msra.mxu0 %v2317
        %2349 = vmatprep.subr.bf16.mxu0 0
        %2350 = vmatpush2.bf16.msra.mxu0 0
        %2351 = vmatprep.subr.bf16.mxu0 0
        %2352 = vmatpush2.bf16.msra.mxu0 0
        %2353 = vmatprep.subr.bf16.mxu0 0
        %2354 = vmatpush2.bf16.msra.mxu0 0
        %2355 = vmatprep.subr.bf16.mxu0 0
        %2356 = vmatpush2.bf16.msra.mxu0 0
        %2357 = vmatprep.subr.bf16.mxu0 0
        %2358 = vmatpush2.bf16.msra.mxu0 0
        %2359 = vmatprep.subr.bf16.mxu0 0
        %2360 = vmatpush2.bf16.msra.mxu0 0
        %2361 = vmatprep.subr.bf16.mxu0 0
        %2362 = vmatpush2.bf16.msra.mxu0 0
        %2363 = vmatprep.subr.bf16.mxu0 0
        %2364 = vmatpush2.bf16.msra.mxu0 0
        %2365 = vmatprep.mubr.bf16.mxu0 0
        %2366 = vmatmul.mubr.bf16.gmra.mxu0 %v2261
        %v2367 = vpop.f32.mrf.mxu0
        %v2368 = vadd.f32 %v2283, %v2367
        %v2369 = vpop.f32.mrf.mxu0
        %v2370 = vpop.f32.mrf.mxu0
        %v2371 = vadd.f32 %v2283, %v2370
        %v2372 = vpop.f32.mrf.mxu0
        %2373 = vdwg.mxu0
        %v2374 = vstv %s491
        %v2375 = vmul.f32 %v2214, %v2374
        %v2376 = vmul.f32 %v2217, %v2374
        %v2377 = vadd.f32 %v2375, %v2368
        %v2378 = vadd.f32 %v2376, %v2371
        %v2379 = vmax.f32 %v2377, 0.0
        %v2380 = vmax.f32 %v2378, 0.0
        %2381 = vst [vmem:[%s489] sm:$0xff] %v2379
        %2382 = vst [vmem:[%s489 + $0x8] sm:$0xff] %v2380
        %s2383 = sand.u32 %s276, 1
        %s2384 = scalar_lea.sflag [#allocation4], %s2383
        %s2385 = sand.u32 %s276, 1
        %s2386 = smul.addr %s2385, 16
        %s2387 = scalar_lea.vmem [#allocation15], %s2386
        // Predicated region
        $region93: #{tpu_custom_call.1} parent=63 // pred_check
          %p2388 = pneg %p286
        $region94: #{tpu_custom_call.1} parent=63 // pred_check_branch
          %2390 = sbr.rel (%p2388) target = $region96
        $region95: #{tpu_custom_call.1} parent=63 // pred_region
          %s2392 = ssub.s32 256, 256
          %2393 = vsyncadd %s2384, %s2392
          %s2394 = smul.addr %s32, 2
          %s2395 = smul.addr %s2394, 128
          %s2396 = scalar_lea.hbm %s11, %s2395
          %s2397 = sshll.u32 %s2387, 4
          %s2398 = int_to_ptr.vmem [resolvable:$true] %s2397
          %2403 = dma.vmem_to_hbm [thread:$0]  %s2398, 256, %s2396, %s2384, 128, 128, 8
        $region96: #{tpu_custom_call.1} parent=63 // pred_fallthru
          _
      $region64: #{tpu_custom_call.1} parent=5 // pred_fallthru
        _
      %p2404 = scmp.le.s32.totalorder 2, %s27
      // Predicated region
      $region97: #{tpu_custom_call.1} parent=5 // pred_check
        %p2405 = pneg %p2404
      $region98: #{tpu_custom_call.1} parent=5 // pred_check_branch
        %2407 = sbr.rel (%p2405) target = $region100
      $region99: #{tpu_custom_call.1} parent=5 // pred_region
        %s2408 = ssub.s32 %s27, 2
        // Predicated region
        $region101: #{tpu_custom_call.1} parent=99 // pred_check
          %p2409 = pneg %p292
        $region102: #{tpu_custom_call.1} parent=99 // pred_check_branch
          %2411 = sbr.rel (%p2409) target = $region104
        $region103: #{tpu_custom_call.1} parent=99 // pred_region
          %s2412 = sand.u32 %s277, 1
          %s2413 = scalar_lea.sflag [#allocation4], %s2412
          %s2414 = sand.u32 %s277, 1
          %s2415 = smul.addr %s2414, 16
          %s2416 = scalar_lea.vmem [#allocation15], %s2415
          %2417 = dma.done %s2413, 256
        $region104: #{tpu_custom_call.1} parent=99 // pred_fallthru
          _
      $region100: #{tpu_custom_call.1} parent=5 // pred_fallthru
        _
    $region6: #{tpu_custom_call.1} parent=1 // loop_footer
      %s31 = sadd.s32 1, %s27
    $region7: #{tpu_custom_call.1} parent=1 // loop_footer_branch
      %26 = sbr.rel target = $region3
    $region8: #{tpu_custom_call.1} parent=1 // loop_exit
      _
    %2418 = vsyncpa [#allocation3], 1
    %s2419 = scalar_lea.sflag [#allocation3], 1
    %2420 = vsyncpa %s2419, 1
    %2421 = vsyncpa [#allocation8], 1
    %2422 = vsyncpa [#allocation11], 1
    %2423 = vsyncpa [#allocation14], 1
    %2424 = vsyncpa [#allocation4], 1
    %s2425 = scalar_lea.sflag [#allocation4], 1
    %2426 = vsyncpa %s2425, 1
    %2427 = vsyncpa [#allocation5], 1
    %s2428 = scalar_lea.sflag [#allocation5], 1
    %2429 = vsyncpa %s2428, 1

</llo_original>
